<compile_context>
chip_gen: v7x
topology: tpu7x:2x2x1
jax: 0.10.0
libtpu: 0.0.40
codegen_flags: <defaults>
</compile_context>

<pallas_src>
import math
import functools

import jax
import jax.numpy as jnp
from jax.experimental import pallas as pl
from jax.experimental.pallas import tpu as pltpu


# --------------------------------------------------------------------------
# Kernel: one batch element per grid step, all layers inside (fori_loop)
# --------------------------------------------------------------------------
def encoder_kernel(q_ref, qa_ref, pe_ref,
                   wk_ref, bk_ref,        # k_linear (also q: kq_same=True)
                   wv_ref, bv_ref,        # v_linear
                   wo_ref, bo_ref,        # out_proj
                   ln1w_ref, ln1b_ref,    # layer_norm1
                   w1_ref, b1_ref,        # linear1 (d_model -> d_ff)
                   w2_ref, b2_ref,        # linear2 (d_ff -> d_model)
                   ln2w_ref, ln2b_ref,    # layer_norm2
                   out_ref,
                   *, n_blocks, n_heads, d_k):
    _, L, D = q_ref.shape
    f32 = jnp.float32
    bf16 = jnp.bfloat16

    pe = pe_ref[...].astype(f32)                       # (L, D)
    x0 = q_ref[0].astype(f32) + pe                     # query/key stream (L, D)
    y0 = qa_ref[0].astype(f32) + pe                    # value stream, fixed per layer
    y_bf = y0.astype(bf16)

    # Additive causal mask (strict: only col < row allowed) and zero_pad mask,
    # built once from iota (hoisted out of the layer loop).
    row = jax.lax.broadcasted_iota(jnp.int32, (L, L), 0)
    col = jax.lax.broadcasted_iota(jnp.int32, (L, L), 1)
    neg_mask = jnp.where(col < row, 0.0, -1e32).astype(f32)          # (L, L)
    zp = (jax.lax.broadcasted_iota(jnp.int32, (L, 1), 0) != 0).astype(f32)  # (L, 1)

    scale = 1.0 / math.sqrt(d_k)
    ln_eps = 1e-5

    def layer_norm(h, w, b):
        mu = jnp.mean(h, axis=-1, keepdims=True)
        d = h - mu
        var = jnp.mean(d * d, axis=-1, keepdims=True)
        return d * jax.lax.rsqrt(var + ln_eps) * w + b

    def layer_body(blk, x):
        x_bf = x.astype(bf16)

        # Batch-fused projections (kq_same=True: q and k both use k_linear on x).
        qk = jnp.dot(x_bf, wk_ref[blk], preferred_element_type=f32) + bk_ref[blk]  # (L, D)
        v = jnp.dot(y_bf, wv_ref[blk], preferred_element_type=f32) + bv_ref[blk]   # (L, D)

        # Head-batched attention: (H, L, d_k) tensors, one einsum per matmul.
        qh = jnp.transpose((qk * scale).reshape(L, n_heads, d_k), (1, 0, 2)).astype(bf16)
        kh = jnp.transpose(qk.reshape(L, n_heads, d_k), (1, 0, 2)).astype(bf16)
        vh = jnp.transpose(v.reshape(L, n_heads, d_k), (1, 0, 2)).astype(bf16)

        s = jnp.einsum('hid,hjd->hij', qh, kh,
                       preferred_element_type=f32) + neg_mask        # (H, L, L)
        s = s - jnp.max(s, axis=-1, keepdims=True)
        e = jnp.exp(s)
        p = e * pl.reciprocal(jnp.sum(e, axis=-1, keepdims=True), approx=True)

        ctx = jnp.einsum('hij,hjd->hid', p.astype(bf16), vh,
                         preferred_element_type=f32)                  # (H, L, d_k)
        ctx = jnp.transpose(ctx, (1, 0, 2)).reshape(L, D)
        # zero_pad: first query row of the attention context is zeroed,
        # out_proj bias still survives on that row (matches torch reference).
        ctx = ctx * zp

        # Single out_proj matmul with full contraction K = D.
        attn = jnp.dot(ctx.astype(bf16), wo_ref[blk],
                       preferred_element_type=f32) + bo_ref[blk]      # (L, D)

        # Residual + LayerNorm1.
        h1 = layer_norm(x + attn, ln1w_ref[blk], ln1b_ref[blk])

        # Position-wise FFN (ReLU), residual + LayerNorm2.
        f = jnp.dot(h1.astype(bf16), w1_ref[blk], preferred_element_type=f32) + b1_ref[blk]
        f = jnp.maximum(f, 0.0)
        f = jnp.dot(f.astype(bf16), w2_ref[blk], preferred_element_type=f32) + b2_ref[blk]
        return layer_norm(h1 + f, ln2w_ref[blk], ln2b_ref[blk])

    x_out = jax.lax.fori_loop(0, n_blocks, layer_body, x0)
    out_ref[0] = x_out.astype(out_ref.dtype)


# --------------------------------------------------------------------------
# Wrapper
# --------------------------------------------------------------------------
def simplekt_encoder(params, q_embed_data, qa_embed_data, n_heads):
    """Full SimpleKT_Encoder forward (eval mode). Inputs: (B, L, D) float32."""
    B, L, D = q_embed_data.shape
    n_blocks = params["wk"].shape[0]
    d_ff = params["w1"].shape[-1]
    pe = params["pos_emb"][:L]                                        # (L, D)

    kernel = functools.partial(encoder_kernel, n_blocks=n_blocks,
                               n_heads=n_heads, d_k=D // n_heads)

    def batch_spec(shape):                      # per-batch activation blocks
        nd = len(shape)
        return pl.BlockSpec((1,) + tuple(shape[1:]),
                            lambda b, _nd=nd: (b,) + (0,) * (_nd - 1))

    def const_spec(shape):                      # weights: resident, fetched once
        nd = len(shape)
        return pl.BlockSpec(tuple(shape), lambda b, _nd=nd: (0,) * _nd)

    in_specs = [
        batch_spec((B, L, D)), batch_spec((B, L, D)),            # q, qa
        const_spec((L, D)),                                      # positional emb
        const_spec((n_blocks, D, D)), const_spec((n_blocks, 1, D)),       # wk, bk
        const_spec((n_blocks, D, D)), const_spec((n_blocks, 1, D)),       # wv, bv
        const_spec((n_blocks, D, D)), const_spec((n_blocks, 1, D)),       # wo, bo
        const_spec((n_blocks, 1, D)), const_spec((n_blocks, 1, D)),       # ln1 w, b
        const_spec((n_blocks, D, d_ff)), const_spec((n_blocks, 1, d_ff)), # w1, b1
        const_spec((n_blocks, d_ff, D)), const_spec((n_blocks, 1, D)),    # w2, b2
        const_spec((n_blocks, 1, D)), const_spec((n_blocks, 1, D)),       # ln2 w, b
    ]

    operands = (q_embed_data, qa_embed_data, pe,
                params["wk"], params["bk"], params["wv"], params["bv"],
                params["wo"], params["bo"], params["ln1w"], params["ln1b"],
                params["w1"], params["b1"], params["w2"], params["b2"],
                params["ln2w"], params["ln2b"])

    # Explicit VMEM budget: resident weights + double-buffered activation
    # blocks + headroom, clamped to [32 MiB, 64 MiB] (safe on v5e/v6e/v7x).
    resident = sum(int(a.size) * a.dtype.itemsize for a in operands[2:])
    act = 3 * L * D * 4  # q / qa / out blocks (f32) per grid step
    vmem_limit = int(max(32 << 20, min(2 * (resident + act) + (8 << 20), 64 << 20)))

    return pl.pallas_call(
        kernel,
        out_shape=jax.ShapeDtypeStruct((B, L, D), q_embed_data.dtype),
        grid=(B,),
        in_specs=in_specs,
        out_specs=pl.BlockSpec((1, L, D), lambda b: (b, 0, 0)),
        compiler_params=pltpu.CompilerParams(
            dimension_semantics=("parallel",),
            vmem_limit_bytes=vmem_limit),
    )(*operands)


# --------------------------------------------------------------------------
# Deterministic parameter init — weights stacked with leading block axis.
# Matmul weights in bf16 (fed to MXU with f32 accumulation); LN/bias in f32.
# --------------------------------------------------------------------------
def cosine_positional_embedding(max_len, d_model):
    # d_model is even -> the 0.1*randn init in the reference is fully
    # overwritten by sin/cos, so the embedding is deterministic.
    position = jnp.arange(max_len, dtype=jnp.float32)[:, None]
    div_term = jnp.exp(jnp.arange(0, d_model, 2, dtype=jnp.float32)
                       * (-math.log(10000.0) / d_model))
    ang = position * div_term
    pe = jnp.zeros((max_len, d_model), jnp.float32)
    pe = pe.at[:, 0::2].set(jnp.sin(ang))
    pe = pe.at[:, 1::2].set(jnp.cos(ang))
    return pe


def xavier_uniform(key, fan_in, fan_out):
    bound = math.sqrt(6.0 / (fan_in + fan_out))
    return jax.random.uniform(key, (fan_in, fan_out), jnp.float32, -bound, bound)


def init_params(key, n_blocks, d_model, d_ff, max_len):
    wk, wv, wo, w1, w2 = [], [], [], [], []
    for i in range(n_blocks):
        k = jax.random.fold_in(key, i)
        kk, kv, ko, k1, k2 = jax.random.split(k, 5)
        wk.append(xavier_uniform(kk, d_model, d_model))
        wv.append(xavier_uniform(kv, d_model, d_model))
        wo.append(xavier_uniform(ko, d_model, d_model))
        w1.append(xavier_uniform(k1, d_model, d_ff))
        w2.append(xavier_uniform(k2, d_ff, d_model))
    stack_bf16 = lambda xs: jnp.stack(xs).astype(jnp.bfloat16)
    zeros_d = jnp.zeros((n_blocks, 1, d_model), jnp.float32)
    ones_d = jnp.ones((n_blocks, 1, d_model), jnp.float32)
    return dict(
        wk=stack_bf16(wk), bk=zeros_d,
        wv=stack_bf16(wv), bv=zeros_d,
        wo=stack_bf16(wo), bo=zeros_d,
        ln1w=ones_d, ln1b=zeros_d,
        w1=stack_bf16(w1), b1=jnp.zeros((n_blocks, 1, d_ff), jnp.float32),
        w2=stack_bf16(w2), b2=zeros_d,
        ln2w=ones_d, ln2b=zeros_d,
        pos_emb=cosine_positional_embedding(max_len, d_model),
    )


# --------------------------------------------------------------------------
if __name__ == "__main__":
    # Small, module-consistent shapes.
    B, L, D = 2, 8, 32          # batch, seq (maxproblem window), hidden_units
    n_heads, d_ff = 2, 64
    n_blocks, max_len = 2, 16

    key = jax.random.PRNGKey(0)
    kq, kqa, kp = jax.random.split(key, 3)
    q_embed_data = jax.random.normal(kq, (B, L, D), jnp.float32)
    qa_embed_data = jax.random.normal(kqa, (B, L, D), jnp.float32)

    params = init_params(kp, n_blocks, D, d_ff, max_len)

    out = simplekt_encoder(params, q_embed_data, qa_embed_data, n_heads)
    jax.block_until_ready(out)
    assert out.shape == (B, L, D)
    assert bool(jnp.all(jnp.isfinite(out)))
    print("KERNEL_OK")
</pallas_src>

<mosaic_0001>
module attributes {stable_mosaic.version = 11 : i64} {
  func.func @encoder_kernel(%arg0: i32, %arg1: memref<1x8x32xf32, #tpu.memory_space<vmem>>, %arg2: memref<1x8x32xf32, #tpu.memory_space<vmem>>, %arg3: memref<8x32xf32, #tpu.memory_space<vmem>>, %arg4: memref<2x32x32xbf16, #tpu.memory_space<vmem>>, %arg5: memref<2x1x32xf32, #tpu.memory_space<vmem>>, %arg6: memref<2x32x32xbf16, #tpu.memory_space<vmem>>, %arg7: memref<2x1x32xf32, #tpu.memory_space<vmem>>, %arg8: memref<2x32x32xbf16, #tpu.memory_space<vmem>>, %arg9: memref<2x1x32xf32, #tpu.memory_space<vmem>>, %arg10: memref<2x1x32xf32, #tpu.memory_space<vmem>>, %arg11: memref<2x1x32xf32, #tpu.memory_space<vmem>>, %arg12: memref<2x32x64xbf16, #tpu.memory_space<vmem>>, %arg13: memref<2x1x64xf32, #tpu.memory_space<vmem>>, %arg14: memref<2x64x32xbf16, #tpu.memory_space<vmem>>, %arg15: memref<2x1x32xf32, #tpu.memory_space<vmem>>, %arg16: memref<2x1x32xf32, #tpu.memory_space<vmem>>, %arg17: memref<2x1x32xf32, #tpu.memory_space<vmem>>, %arg18: memref<1x8x32xf32, #tpu.memory_space<vmem>>) attributes {dimension_semantics = [#tpu.dimension_semantics<parallel>], iteration_bounds = array<i64: 2>, scalar_prefetch = 0 : i64, scratch_operands = 0 : i64, tpu.core_type = #tpu.core_type<tc>, window_params = [{transform_indices = @transform_0, window_bounds = array<i64: 1, 8, 32>}, {transform_indices = @transform_1, window_bounds = array<i64: 1, 8, 32>}, {pipeline_mode = #tpu.pipeline_mode<synchronous>, transform_indices = @transform_2, window_bounds = array<i64: 8, 32>}, {pipeline_mode = #tpu.pipeline_mode<synchronous>, transform_indices = @transform_3, window_bounds = array<i64: 2, 32, 32>}, {pipeline_mode = #tpu.pipeline_mode<synchronous>, transform_indices = @transform_4, window_bounds = array<i64: 2, 1, 32>}, {pipeline_mode = #tpu.pipeline_mode<synchronous>, transform_indices = @transform_5, window_bounds = array<i64: 2, 32, 32>}, {pipeline_mode = #tpu.pipeline_mode<synchronous>, transform_indices = @transform_6, window_bounds = array<i64: 2, 1, 32>}, {pipeline_mode = #tpu.pipeline_mode<synchronous>, transform_indices = @transform_7, window_bounds = array<i64: 2, 32, 32>}, {pipeline_mode = #tpu.pipeline_mode<synchronous>, transform_indices = @transform_8, window_bounds = array<i64: 2, 1, 32>}, {pipeline_mode = #tpu.pipeline_mode<synchronous>, transform_indices = @transform_9, window_bounds = array<i64: 2, 1, 32>}, {pipeline_mode = #tpu.pipeline_mode<synchronous>, transform_indices = @transform_10, window_bounds = array<i64: 2, 1, 32>}, {pipeline_mode = #tpu.pipeline_mode<synchronous>, transform_indices = @transform_11, window_bounds = array<i64: 2, 32, 64>}, {pipeline_mode = #tpu.pipeline_mode<synchronous>, transform_indices = @transform_12, window_bounds = array<i64: 2, 1, 64>}, {pipeline_mode = #tpu.pipeline_mode<synchronous>, transform_indices = @transform_13, window_bounds = array<i64: 2, 64, 32>}, {pipeline_mode = #tpu.pipeline_mode<synchronous>, transform_indices = @transform_14, window_bounds = array<i64: 2, 1, 32>}, {pipeline_mode = #tpu.pipeline_mode<synchronous>, transform_indices = @transform_15, window_bounds = array<i64: 2, 1, 32>}, {pipeline_mode = #tpu.pipeline_mode<synchronous>, transform_indices = @transform_16, window_bounds = array<i64: 2, 1, 32>}, {transform_indices = @transform_17, window_bounds = array<i64: 1, 8, 32>}]} {
    %c0 = arith.constant 0 : index
    %c0_0 = arith.constant 0 : index
    %0 = vector.load %arg3[%c0, %c0_0] : memref<8x32xf32, #tpu.memory_space<vmem>>, vector<8x32xf32>
    %c0_1 = arith.constant 0 : index
    %c0_2 = arith.constant 0 : index
    %c0_3 = arith.constant 0 : index
    %1 = vector.load %arg1[%c0_1, %c0_2, %c0_3] : memref<1x8x32xf32, #tpu.memory_space<vmem>>, vector<1x8x32xf32>
    %2 = vector.shape_cast %1 : vector<1x8x32xf32> to vector<8x32xf32>
    %3 = arith.addf %2, %0 : vector<8x32xf32>
    %c0_4 = arith.constant 0 : index
    %c0_5 = arith.constant 0 : index
    %c0_6 = arith.constant 0 : index
    %4 = vector.load %arg2[%c0_4, %c0_5, %c0_6] : memref<1x8x32xf32, #tpu.memory_space<vmem>>, vector<1x8x32xf32>
    %5 = vector.shape_cast %4 : vector<1x8x32xf32> to vector<8x32xf32>
    %6 = arith.addf %5, %0 : vector<8x32xf32>
    %7 = arith.truncf %6 : vector<8x32xf32> to vector<8x32xbf16>
    %8 = tpu.iota {dimensions = array<i32: 0>} : vector<8x8xi32>
    %9 = tpu.iota {dimensions = array<i32: 1>} : vector<8x8xi32>
    %10 = arith.cmpi slt, %9, %8 : vector<8x8xi32>
    %cst = arith.constant 0.000000e+00 : f32
    %cst_7 = arith.constant -1.000000e+32 : f32
    %11 = vector.broadcast %cst : f32 to vector<8x8xf32>
    %12 = vector.broadcast %cst_7 : f32 to vector<8x8xf32>
    %13 = arith.select %10, %11, %12 : vector<8x8xi1>, vector<8x8xf32>
    %14 = tpu.iota {dimensions = array<i32: 0>} : vector<8x1xi32>
    %c0_i32 = arith.constant 0 : i32
    %15 = vector.broadcast %c0_i32 : i32 to vector<8x1xi32>
    %16 = arith.cmpi ne, %14, %15 : vector<8x1xi32>
    %17 = arith.extui %16 : vector<8x1xi1> to vector<8x1xi32>
    %18 = arith.sitofp %17 : vector<8x1xi32> to vector<8x1xf32>
    %c0_i32_8 = arith.constant 0 : i32
    %c2_i32 = arith.constant 2 : i32
    %19 = arith.addi %c0_i32_8, %c2_i32 : i32
    %c1_i32 = arith.constant 1 : i32
    %20 = scf.for %arg19 = %c0_i32_8 to %19 step %c1_i32 iter_args(%arg20 = %3) -> (vector<8x32xf32>)  : i32 {
      %24 = arith.truncf %arg20 : vector<8x32xf32> to vector<8x32xbf16>
      %25 = arith.index_cast %arg19 : i32 to index
      %c0_13 = arith.constant 0 : index
      %c0_14 = arith.constant 0 : index
      %26 = vector.load %arg4[%25, %c0_13, %c0_14] : memref<2x32x32xbf16, #tpu.memory_space<vmem>>, vector<1x32x32xbf16>
      %27 = vector.shape_cast %26 : vector<1x32x32xbf16> to vector<32x32xbf16>
      %cst_15 = arith.constant dense<0.000000e+00> : vector<8x32xf32>
      %28 = tpu.matmul %24, %27, %cst_15 {dimension_numbers = #tpu.dot_dimension_numbers<[1], [0], [0], [1], [0, 0, 1, 1], [], []>} : vector<8x32xbf16>, vector<32x32xbf16>, vector<8x32xf32> -> vector<8x32xf32>
      %29 = arith.index_cast %arg19 : i32 to index
      %c0_16 = arith.constant 0 : index
      %c0_17 = arith.constant 0 : index
      %30 = vector.load %arg5[%29, %c0_16, %c0_17] : memref<2x1x32xf32, #tpu.memory_space<vmem>>, vector<1x1x32xf32>
      %31 = vector.shape_cast %30 : vector<1x1x32xf32> to vector<1x32xf32>
      %32 = vector.broadcast %31 : vector<1x32xf32> to vector<8x32xf32>
      %33 = arith.addf %28, %32 : vector<8x32xf32>
      %34 = arith.index_cast %arg19 : i32 to index
      %c0_18 = arith.constant 0 : index
      %c0_19 = arith.constant 0 : index
      %35 = vector.load %arg6[%34, %c0_18, %c0_19] : memref<2x32x32xbf16, #tpu.memory_space<vmem>>, vector<1x32x32xbf16>
      %36 = vector.shape_cast %35 : vector<1x32x32xbf16> to vector<32x32xbf16>
      %cst_20 = arith.constant dense<0.000000e+00> : vector<8x32xf32>
      %37 = tpu.matmul %7, %36, %cst_20 {dimension_numbers = #tpu.dot_dimension_numbers<[1], [0], [0], [1], [0, 0, 1, 1], [], []>} : vector<8x32xbf16>, vector<32x32xbf16>, vector<8x32xf32> -> vector<8x32xf32>
      %38 = arith.index_cast %arg19 : i32 to index
      %c0_21 = arith.constant 0 : index
      %c0_22 = arith.constant 0 : index
      %39 = vector.load %arg7[%38, %c0_21, %c0_22] : memref<2x1x32xf32, #tpu.memory_space<vmem>>, vector<1x1x32xf32>
      %40 = vector.shape_cast %39 : vector<1x1x32xf32> to vector<1x32xf32>
      %41 = vector.broadcast %40 : vector<1x32xf32> to vector<8x32xf32>
      %42 = arith.addf %37, %41 : vector<8x32xf32>
      %cst_23 = arith.constant 2.500000e-01 : f32
      %43 = vector.broadcast %cst_23 : f32 to vector<8x32xf32>
      %44 = arith.mulf %33, %43 : vector<8x32xf32>
      %45 = vector.shape_cast %44 : vector<8x32xf32> to vector<8x2x16xf32>
      %46 = tpu.transpose %45, [1, 0, 2] : vector<8x2x16xf32> -> vector<2x8x16xf32>
      %47 = arith.truncf %46 : vector<2x8x16xf32> to vector<2x8x16xbf16>
      %48 = vector.shape_cast %33 : vector<8x32xf32> to vector<8x2x16xf32>
      %49 = tpu.transpose %48, [1, 0, 2] : vector<8x2x16xf32> -> vector<2x8x16xf32>
      %50 = arith.truncf %49 : vector<2x8x16xf32> to vector<2x8x16xbf16>
      %51 = vector.shape_cast %42 : vector<8x32xf32> to vector<8x2x16xf32>
      %52 = tpu.transpose %51, [1, 0, 2] : vector<8x2x16xf32> -> vector<2x8x16xf32>
      %53 = arith.truncf %52 : vector<2x8x16xf32> to vector<2x8x16xbf16>
      "tpu.trace_start"() <{level = 10 : i32, message = "hid,hjd->hij"}> : () -> ()
      %cst_24 = arith.constant dense<0.000000e+00> : vector<2x8x8xf32>
      %54 = tpu.matmul %47, %50, %cst_24 {dimension_numbers = #tpu.dot_dimension_numbers<[2], [2], [1], [1], [0, 0, 0, 1, 1, 1], [0], [0]>} : vector<2x8x16xbf16>, vector<2x8x16xbf16>, vector<2x8x8xf32> -> vector<2x8x8xf32>
      "tpu.trace_stop"() : () -> ()
      %55 = vector.shape_cast %13 : vector<8x8xf32> to vector<1x8x8xf32>
      %56 = vector.broadcast %55 : vector<1x8x8xf32> to vector<2x8x8xf32>
      %57 = arith.addf %54, %56 : vector<2x8x8xf32>
      %cst_25 = arith.constant dense<0xFF800000> : vector<2x8xf32>
      %58 = vector.multi_reduction <maximumf>, %57, %cst_25 [2] : vector<2x8x8xf32> to vector<2x8xf32>
      %59 = vector.shape_cast %58 : vector<2x8xf32> to vector<2x8x1xf32>
      %60 = vector.broadcast %59 : vector<2x8x1xf32> to vector<2x8x8xf32>
      %61 = arith.subf %57, %60 : vector<2x8x8xf32>
      %62 = math.exp %61 : vector<2x8x8xf32>
      %cst_26 = arith.constant dense<0.000000e+00> : vector<2x8xf32>
      %63 = vector.multi_reduction <add>, %62, %cst_26 [2] : vector<2x8x8xf32> to vector<2x8xf32>
      %64 = vector.shape_cast %63 : vector<2x8xf32> to vector<2x8x1xf32>
      %65 = tpu.reciprocal %64 {approx = true} : vector<2x8x1xf32> -> vector<2x8x1xf32>
      %66 = vector.broadcast %65 : vector<2x8x1xf32> to vector<2x8x8xf32>
      %67 = arith.mulf %62, %66 : vector<2x8x8xf32>
      %68 = arith.truncf %67 : vector<2x8x8xf32> to vector<2x8x8xbf16>
      "tpu.trace_start"() <{level = 10 : i32, message = "hij,hjd->hid"}> : () -> ()
      %cst_27 = arith.constant dense<0.000000e+00> : vector<2x8x16xf32>
      %69 = tpu.matmul %68, %53, %cst_27 {dimension_numbers = #tpu.dot_dimension_numbers<[2], [1], [1], [2], [0, 0, 0, 1, 1, 2], [0], [0]>} : vector<2x8x8xbf16>, vector<2x8x16xbf16>, vector<2x8x16xf32> -> vector<2x8x16xf32>
      "tpu.trace_stop"() : () -> ()
      %70 = tpu.transpose %69, [1, 0, 2] : vector<2x8x16xf32> -> vector<8x2x16xf32>
      %71 = vector.shape_cast %70 : vector<8x2x16xf32> to vector<8x32xf32>
      %72 = vector.broadcast %18 : vector<8x1xf32> to vector<8x32xf32>
      %73 = arith.mulf %71, %72 : vector<8x32xf32>
      %74 = arith.truncf %73 : vector<8x32xf32> to vector<8x32xbf16>
      %75 = arith.index_cast %arg19 : i32 to index
      %c0_28 = arith.constant 0 : index
      %c0_29 = arith.constant 0 : index
      %76 = vector.load %arg8[%75, %c0_28, %c0_29] : memref<2x32x32xbf16, #tpu.memory_space<vmem>>, vector<1x32x32xbf16>
      %77 = vector.shape_cast %76 : vector<1x32x32xbf16> to vector<32x32xbf16>
      %cst_30 = arith.constant dense<0.000000e+00> : vector<8x32xf32>
      %78 = tpu.matmul %74, %77, %cst_30 {dimension_numbers = #tpu.dot_dimension_numbers<[1], [0], [0], [1], [0, 0, 1, 1], [], []>} : vector<8x32xbf16>, vector<32x32xbf16>, vector<8x32xf32> -> vector<8x32xf32>
      %79 = arith.index_cast %arg19 : i32 to index
      %c0_31 = arith.constant 0 : index
      %c0_32 = arith.constant 0 : index
      %80 = vector.load %arg9[%79, %c0_31, %c0_32] : memref<2x1x32xf32, #tpu.memory_space<vmem>>, vector<1x1x32xf32>
      %81 = vector.shape_cast %80 : vector<1x1x32xf32> to vector<1x32xf32>
      %82 = vector.broadcast %81 : vector<1x32xf32> to vector<8x32xf32>
      %83 = arith.addf %78, %82 : vector<8x32xf32>
      %84 = arith.addf %arg20, %83 : vector<8x32xf32>
      %85 = arith.index_cast %arg19 : i32 to index
      %c0_33 = arith.constant 0 : index
      %c0_34 = arith.constant 0 : index
      %86 = vector.load %arg10[%85, %c0_33, %c0_34] : memref<2x1x32xf32, #tpu.memory_space<vmem>>, vector<1x1x32xf32>
      %87 = vector.shape_cast %86 : vector<1x1x32xf32> to vector<1x32xf32>
      %88 = arith.index_cast %arg19 : i32 to index
      %c0_35 = arith.constant 0 : index
      %c0_36 = arith.constant 0 : index
      %89 = vector.load %arg11[%88, %c0_35, %c0_36] : memref<2x1x32xf32, #tpu.memory_space<vmem>>, vector<1x1x32xf32>
      %90 = vector.shape_cast %89 : vector<1x1x32xf32> to vector<1x32xf32>
      %cst_37 = arith.constant dense<0.000000e+00> : vector<8xf32>
      %91 = vector.multi_reduction <add>, %84, %cst_37 [1] : vector<8x32xf32> to vector<8xf32>
      %92 = vector.shape_cast %91 : vector<8xf32> to vector<8x1xf32>
      %cst_38 = arith.constant 3.200000e+01 : f32
      %93 = vector.broadcast %cst_38 : f32 to vector<8x1xf32>
      %94 = arith.divf %92, %93 : vector<8x1xf32>
      %95 = vector.broadcast %94 : vector<8x1xf32> to vector<8x32xf32>
      %96 = arith.subf %84, %95 : vector<8x32xf32>
      %97 = arith.mulf %96, %96 : vector<8x32xf32>
      %cst_39 = arith.constant dense<0.000000e+00> : vector<8xf32>
      %98 = vector.multi_reduction <add>, %97, %cst_39 [1] : vector<8x32xf32> to vector<8xf32>
      %99 = vector.shape_cast %98 : vector<8xf32> to vector<8x1xf32>
      %cst_40 = arith.constant 3.200000e+01 : f32
      %100 = vector.broadcast %cst_40 : f32 to vector<8x1xf32>
      %101 = arith.divf %99, %100 : vector<8x1xf32>
      %cst_41 = arith.constant 9.99999974E-6 : f32
      %102 = vector.broadcast %cst_41 : f32 to vector<8x1xf32>
      %103 = arith.addf %101, %102 : vector<8x1xf32>
      %104 = math.rsqrt %103 : vector<8x1xf32>
      %105 = vector.broadcast %104 : vector<8x1xf32> to vector<8x32xf32>
      %106 = arith.mulf %96, %105 : vector<8x32xf32>
      %107 = vector.broadcast %87 : vector<1x32xf32> to vector<8x32xf32>
      %108 = arith.mulf %106, %107 : vector<8x32xf32>
      %109 = vector.broadcast %90 : vector<1x32xf32> to vector<8x32xf32>
      %110 = arith.addf %108, %109 : vector<8x32xf32>
      %111 = arith.truncf %110 : vector<8x32xf32> to vector<8x32xbf16>
      %112 = arith.index_cast %arg19 : i32 to index
      %c0_42 = arith.constant 0 : index
      %c0_43 = arith.constant 0 : index
      %113 = vector.load %arg12[%112, %c0_42, %c0_43] : memref<2x32x64xbf16, #tpu.memory_space<vmem>>, vector<1x32x64xbf16>
      %114 = vector.shape_cast %113 : vector<1x32x64xbf16> to vector<32x64xbf16>
      %cst_44 = arith.constant dense<0.000000e+00> : vector<8x64xf32>
      %115 = tpu.matmul %111, %114, %cst_44 {dimension_numbers = #tpu.dot_dimension_numbers<[1], [0], [0], [1], [0, 0, 1, 1], [], []>} : vector<8x32xbf16>, vector<32x64xbf16>, vector<8x64xf32> -> vector<8x64xf32>
      %116 = arith.index_cast %arg19 : i32 to index
      %c0_45 = arith.constant 0 : index
      %c0_46 = arith.constant 0 : index
      %117 = vector.load %arg13[%116, %c0_45, %c0_46] : memref<2x1x64xf32, #tpu.memory_space<vmem>>, vector<1x1x64xf32>
      %118 = vector.shape_cast %117 : vector<1x1x64xf32> to vector<1x64xf32>
      %119 = vector.broadcast %118 : vector<1x64xf32> to vector<8x64xf32>
      %120 = arith.addf %115, %119 : vector<8x64xf32>
      %cst_47 = arith.constant 0.000000e+00 : f32
      %121 = vector.broadcast %cst_47 : f32 to vector<8x64xf32>
      %122 = arith.maximumf %120, %121 : vector<8x64xf32>
      %123 = arith.truncf %122 : vector<8x64xf32> to vector<8x64xbf16>
      %124 = arith.index_cast %arg19 : i32 to index
      %c0_48 = arith.constant 0 : index
      %c0_49 = arith.constant 0 : index
      %125 = vector.load %arg14[%124, %c0_48, %c0_49] : memref<2x64x32xbf16, #tpu.memory_space<vmem>>, vector<1x64x32xbf16>
      %126 = vector.shape_cast %125 : vector<1x64x32xbf16> to vector<64x32xbf16>
      %cst_50 = arith.constant dense<0.000000e+00> : vector<8x32xf32>
      %127 = tpu.matmul %123, %126, %cst_50 {dimension_numbers = #tpu.dot_dimension_numbers<[1], [0], [0], [1], [0, 0, 1, 1], [], []>} : vector<8x64xbf16>, vector<64x32xbf16>, vector<8x32xf32> -> vector<8x32xf32>
      %128 = arith.index_cast %arg19 : i32 to index
      %c0_51 = arith.constant 0 : index
      %c0_52 = arith.constant 0 : index
      %129 = vector.load %arg15[%128, %c0_51, %c0_52] : memref<2x1x32xf32, #tpu.memory_space<vmem>>, vector<1x1x32xf32>
      %130 = vector.shape_cast %129 : vector<1x1x32xf32> to vector<1x32xf32>
      %131 = vector.broadcast %130 : vector<1x32xf32> to vector<8x32xf32>
      %132 = arith.addf %127, %131 : vector<8x32xf32>
      %133 = arith.addf %110, %132 : vector<8x32xf32>
      %134 = arith.index_cast %arg19 : i32 to index
      %c0_53 = arith.constant 0 : index
      %c0_54 = arith.constant 0 : index
      %135 = vector.load %arg16[%134, %c0_53, %c0_54] : memref<2x1x32xf32, #tpu.memory_space<vmem>>, vector<1x1x32xf32>
      %136 = vector.shape_cast %135 : vector<1x1x32xf32> to vector<1x32xf32>
      %137 = arith.index_cast %arg19 : i32 to index
      %c0_55 = arith.constant 0 : index
      %c0_56 = arith.constant 0 : index
      %138 = vector.load %arg17[%137, %c0_55, %c0_56] : memref<2x1x32xf32, #tpu.memory_space<vmem>>, vector<1x1x32xf32>
      %139 = vector.shape_cast %138 : vector<1x1x32xf32> to vector<1x32xf32>
      %cst_57 = arith.constant dense<0.000000e+00> : vector<8xf32>
      %140 = vector.multi_reduction <add>, %133, %cst_57 [1] : vector<8x32xf32> to vector<8xf32>
      %141 = vector.shape_cast %140 : vector<8xf32> to vector<8x1xf32>
      %cst_58 = arith.constant 3.200000e+01 : f32
      %142 = vector.broadcast %cst_58 : f32 to vector<8x1xf32>
      %143 = arith.divf %141, %142 : vector<8x1xf32>
      %144 = vector.broadcast %143 : vector<8x1xf32> to vector<8x32xf32>
      %145 = arith.subf %133, %144 : vector<8x32xf32>
      %146 = arith.mulf %145, %145 : vector<8x32xf32>
      %cst_59 = arith.constant dense<0.000000e+00> : vector<8xf32>
      %147 = vector.multi_reduction <add>, %146, %cst_59 [1] : vector<8x32xf32> to vector<8xf32>
      %148 = vector.shape_cast %147 : vector<8xf32> to vector<8x1xf32>
      %cst_60 = arith.constant 3.200000e+01 : f32
      %149 = vector.broadcast %cst_60 : f32 to vector<8x1xf32>
      %150 = arith.divf %148, %149 : vector<8x1xf32>
      %cst_61 = arith.constant 9.99999974E-6 : f32
      %151 = vector.broadcast %cst_61 : f32 to vector<8x1xf32>
      %152 = arith.addf %150, %151 : vector<8x1xf32>
      %153 = math.rsqrt %152 : vector<8x1xf32>
      %154 = vector.broadcast %153 : vector<8x1xf32> to vector<8x32xf32>
      %155 = arith.mulf %145, %154 : vector<8x32xf32>
      %156 = vector.broadcast %136 : vector<1x32xf32> to vector<8x32xf32>
      %157 = arith.mulf %155, %156 : vector<8x32xf32>
      %158 = vector.broadcast %139 : vector<1x32xf32> to vector<8x32xf32>
      %159 = arith.addf %157, %158 : vector<8x32xf32>
      scf.yield %159 : vector<8x32xf32>
    }
    %c2_i32_9 = arith.constant 2 : i32
    %c0_10 = arith.constant 0 : index
    %c0_11 = arith.constant 0 : index
    %c0_12 = arith.constant 0 : index
    %21 = vector.load %arg18[%c0_10, %c0_11, %c0_12] : memref<1x8x32xf32, #tpu.memory_space<vmem>>, vector<1x8x32xf32>
    %22 = vector.shape_cast %21 : vector<1x8x32xf32> to vector<8x32xf32>
    %23 = vector.shape_cast %20 : vector<8x32xf32> to vector<1x8x32xf32>
    tpu.vector_store %arg18[%c0_10, %c0_11, %c0_12], %23 {strides = array<i32>} : memref<1x8x32xf32, #tpu.memory_space<vmem>>, vector<1x8x32xf32>,
    return
  }
  func.func @transform_0(%arg0: i32) -> (i32, i32, i32) {
    %c0_i32 = arith.constant 0 : i32
    %c0_i32_0 = arith.constant 0 : i32
    %c0_i32_1 = arith.constant 0 : i32
    return %arg0, %c0_i32, %c0_i32_0 : i32, i32, i32
  }
  func.func @transform_1(%arg0: i32) -> (i32, i32, i32) {
    %c0_i32 = arith.constant 0 : i32
    %c0_i32_0 = arith.constant 0 : i32
    %c0_i32_1 = arith.constant 0 : i32
    return %arg0, %c0_i32, %c0_i32_0 : i32, i32, i32
  }
  func.func @transform_2(%arg0: i32) -> (i32, i32) {
    %c0_i32 = arith.constant 0 : i32
    %c0_i32_0 = arith.constant 0 : i32
    %c0_i32_1 = arith.constant 0 : i32
    return %c0_i32, %c0_i32_0 : i32, i32
  }
  func.func @transform_3(%arg0: i32) -> (i32, i32, i32) {
    %c0_i32 = arith.constant 0 : i32
    %c0_i32_0 = arith.constant 0 : i32
    %c0_i32_1 = arith.constant 0 : i32
    %c0_i32_2 = arith.constant 0 : i32
    return %c0_i32, %c0_i32_0, %c0_i32_1 : i32, i32, i32
  }
  func.func @transform_4(%arg0: i32) -> (i32, i32, i32) {
    %c0_i32 = arith.constant 0 : i32
    %c0_i32_0 = arith.constant 0 : i32
    %c0_i32_1 = arith.constant 0 : i32
    %c0_i32_2 = arith.constant 0 : i32
    return %c0_i32, %c0_i32_0, %c0_i32_1 : i32, i32, i32
  }
  func.func @transform_5(%arg0: i32) -> (i32, i32, i32) {
    %c0_i32 = arith.constant 0 : i32
    %c0_i32_0 = arith.constant 0 : i32
    %c0_i32_1 = arith.constant 0 : i32
    %c0_i32_2 = arith.constant 0 : i32
    return %c0_i32, %c0_i32_0, %c0_i32_1 : i32, i32, i32
  }
  func.func @transform_6(%arg0: i32) -> (i32, i32, i32) {
    %c0_i32 = arith.constant 0 : i32
    %c0_i32_0 = arith.constant 0 : i32
    %c0_i32_1 = arith.constant 0 : i32
    %c0_i32_2 = arith.constant 0 : i32
    return %c0_i32, %c0_i32_0, %c0_i32_1 : i32, i32, i32
  }
  func.func @transform_7(%arg0: i32) -> (i32, i32, i32) {
    %c0_i32 = arith.constant 0 : i32
    %c0_i32_0 = arith.constant 0 : i32
    %c0_i32_1 = arith.constant 0 : i32
    %c0_i32_2 = arith.constant 0 : i32
    return %c0_i32, %c0_i32_0, %c0_i32_1 : i32, i32, i32
  }
  func.func @transform_8(%arg0: i32) -> (i32, i32, i32) {
    %c0_i32 = arith.constant 0 : i32
    %c0_i32_0 = arith.constant 0 : i32
    %c0_i32_1 = arith.constant 0 : i32
    %c0_i32_2 = arith.constant 0 : i32
    return %c0_i32, %c0_i32_0, %c0_i32_1 : i32, i32, i32
  }
  func.func @transform_9(%arg0: i32) -> (i32, i32, i32) {
    %c0_i32 = arith.constant 0 : i32
    %c0_i32_0 = arith.constant 0 : i32
    %c0_i32_1 = arith.constant 0 : i32
    %c0_i32_2 = arith.constant 0 : i32
    return %c0_i32, %c0_i32_0, %c0_i32_1 : i32, i32, i32
  }
  func.func @transform_10(%arg0: i32) -> (i32, i32, i32) {
    %c0_i32 = arith.constant 0 : i32
    %c0_i32_0 = arith.constant 0 : i32
    %c0_i32_1 = arith.constant 0 : i32
    %c0_i32_2 = arith.constant 0 : i32
    return %c0_i32, %c0_i32_0, %c0_i32_1 : i32, i32, i32
  }
  func.func @transform_11(%arg0: i32) -> (i32, i32, i32) {
    %c0_i32 = arith.constant 0 : i32
    %c0_i32_0 = arith.constant 0 : i32
    %c0_i32_1 = arith.constant 0 : i32
    %c0_i32_2 = arith.constant 0 : i32
    return %c0_i32, %c0_i32_0, %c0_i32_1 : i32, i32, i32
  }
  func.func @transform_12(%arg0: i32) -> (i32, i32, i32) {
    %c0_i32 = arith.constant 0 : i32
    %c0_i32_0 = arith.constant 0 : i32
    %c0_i32_1 = arith.constant 0 : i32
    %c0_i32_2 = arith.constant 0 : i32
    return %c0_i32, %c0_i32_0, %c0_i32_1 : i32, i32, i32
  }
  func.func @transform_13(%arg0: i32) -> (i32, i32, i32) {
    %c0_i32 = arith.constant 0 : i32
    %c0_i32_0 = arith.constant 0 : i32
    %c0_i32_1 = arith.constant 0 : i32
    %c0_i32_2 = arith.constant 0 : i32
    return %c0_i32, %c0_i32_0, %c0_i32_1 : i32, i32, i32
  }
  func.func @transform_14(%arg0: i32) -> (i32, i32, i32) {
    %c0_i32 = arith.constant 0 : i32
    %c0_i32_0 = arith.constant 0 : i32
    %c0_i32_1 = arith.constant 0 : i32
    %c0_i32_2 = arith.constant 0 : i32
    return %c0_i32, %c0_i32_0, %c0_i32_1 : i32, i32, i32
  }
  func.func @transform_15(%arg0: i32) -> (i32, i32, i32) {
    %c0_i32 = arith.constant 0 : i32
    %c0_i32_0 = arith.constant 0 : i32
    %c0_i32_1 = arith.constant 0 : i32
    %c0_i32_2 = arith.constant 0 : i32
    return %c0_i32, %c0_i32_0, %c0_i32_1 : i32, i32, i32
  }
  func.func @transform_16(%arg0: i32) -> (i32, i32, i32) {
    %c0_i32 = arith.constant 0 : i32
    %c0_i32_0 = arith.constant 0 : i32
    %c0_i32_1 = arith.constant 0 : i32
    %c0_i32_2 = arith.constant 0 : i32
    return %c0_i32, %c0_i32_0, %c0_i32_1 : i32, i32, i32
  }
  func.func @transform_17(%arg0: i32) -> (i32, i32, i32) {
    %c0_i32 = arith.constant 0 : i32
    %c0_i32_0 = arith.constant 0 : i32
    %c0_i32_1 = arith.constant 0 : i32
    return %arg0, %c0_i32, %c0_i32_0 : i32, i32, i32
  }
}

</mosaic_0001>

<llo_original>
// kernel: tpu_custom_call.1
$region0: #{tpu_custom_call.1}
  #allocation0 [shape = 'u32[]', space=smem, size = 0x4, offset = 0x4, fixed_abs, tag = 'smem constant byte address 0x4 - core index']
  #allocation1 [shape = 'u32[144,128]{1,0:T(1,128)}', space=vmem, size = 0x12000, scoped, tag = 'internal scratch']
  %s0 = inlined_call_operand.hbm [shape: f32[2,8,32], index: 0, kind: input, shape index: {}]
  %s1 = inlined_call_operand.hbm [shape: f32[2,8,32], index: 1, kind: input, shape index: {}]
  %s2 = inlined_call_operand.hbm [shape: f32[8,32], index: 2, kind: input, shape index: {}]
  %s3 = inlined_call_operand.vmem [shape: bf16[2,32,32], index: 3, kind: input, shape index: {}]
  %s4 = inlined_call_operand.vmem [shape: f32[2,1,32], index: 4, kind: input, shape index: {}]
  %s5 = inlined_call_operand.vmem [shape: bf16[2,32,32], index: 5, kind: input, shape index: {}]
  %s6 = inlined_call_operand.vmem [shape: f32[2,1,32], index: 6, kind: input, shape index: {}]
  %s7 = inlined_call_operand.vmem [shape: bf16[2,32,32], index: 7, kind: input, shape index: {}]
  %s8 = inlined_call_operand.vmem [shape: f32[2,1,32], index: 8, kind: input, shape index: {}]
  %s9 = inlined_call_operand.vmem [shape: f32[2,1,32], index: 9, kind: input, shape index: {}]
  %s10 = inlined_call_operand.vmem [shape: f32[2,1,32], index: 10, kind: input, shape index: {}]
  %s11 = inlined_call_operand.hbm [shape: bf16[2,32,64], index: 11, kind: input, shape index: {}]
  %s12 = inlined_call_operand.vmem [shape: f32[2,1,64], index: 12, kind: input, shape index: {}]
  %s13 = inlined_call_operand.vmem [shape: bf16[2,64,32], index: 13, kind: input, shape index: {}]
  %s14 = inlined_call_operand.vmem [shape: f32[2,1,32], index: 14, kind: input, shape index: {}]
  %s15 = inlined_call_operand.vmem [shape: f32[2,1,32], index: 15, kind: input, shape index: {}]
  %s16 = inlined_call_operand.vmem [shape: f32[2,1,32], index: 16, kind: input, shape index: {}]
  %s17 = inlined_call_operand.hbm [shape: f32[2,8,32], index: 17, kind: output, shape index: {}]
  %s18 = sld [smem:[#allocation0]]
  $region124: #{tpu_custom_call.1} parent=0
    _
  %s20 = ssub.s32 1, %s18
  %s21 = scalar_select 0, %s20, %s18
  $region1: #{tpu_custom_call.1} parent=0
    #allocation2 [shape = 'u8[8192]{0}', space=vmem, size = 0x2000, scoped, tag = 'input window, operand 0']
    #allocation3 [shape = 's32[2]{0}', space=sflag, size = 0x8, scoped, tag = 'scoped memory for tpu_custom_call.1']
    #allocation4 [shape = 's32[2]{0}', space=sflag, size = 0x8, scoped, tag = 'scoped memory for tpu_custom_call.1']
    #allocation5 [shape = 'u8[8192]{0}', space=vmem, size = 0x2000, scoped, tag = 'input window, operand 1']
    #allocation6 [shape = 's32[2]{0}', space=sflag, size = 0x8, scoped, tag = 'scoped memory for tpu_custom_call.1']
    #allocation7 [shape = 'u8[4096]{0}', space=vmem, size = 0x1000, scoped, tag = 'input window, operand 2, single buffered']
    #allocation8 [shape = 'u8[16384]{0}', space=vmem, size = 0x4000, scoped, tag = 'input window, operand 11, single buffered']
    #allocation9 [shape = 's32[1]{0}', space=sflag, size = 0x4, scoped, tag = 'scoped memory for tpu_custom_call.1']
    #allocation10 [shape = 'u8[8192]{0}', space=vmem, size = 0x2000, scoped, tag = 'output window, operand 0']
    %22 = vsyncpa [#allocation3], 0
    %s23 = scalar_lea.sflag [#allocation3], 1
    %24 = vsyncpa %s23, 0
    %25 = vsyncpa [#allocation6], 0
    %s26 = scalar_lea.sflag [#allocation6], 1
    %27 = vsyncpa %s26, 0
    %28 = vsyncpa [#allocation9], 0
    %29 = vsyncpa [#allocation4], 0
    %s30 = scalar_lea.sflag [#allocation4], 1
    %31 = vsyncpa %s30, 0
    loop: start=0, step=1, limit=4
    $region2: #{tpu_custom_call.1} parent=1 // loop_pre_header
      _
    $region3: #{tpu_custom_call.1} parent=1 // loop_header
      %s33 = sphi 0, %s37
      %p34 = scmp.ge.s32.totalorder %s33, 4
      %s43 = sphi 0, %s45
      %s46 = sphi 0, %s43
      %s47 = sphi 0, %s46
      %s63 = sphi 0, %s47
      %s69 = sphi 0, %s71
      %s72 = sphi 0, %s69
      %s73 = sphi 0, %s72
      %s89 = sphi 0, %s73
      %s93 = sphi 0, %s93
      %s95 = sphi 0, %s93
      %s96 = sphi 0, %s95
      %s110 = sphi 0, %s96
      %s114 = sphi 0, %s114
      %s116 = sphi 0, %s114
      %s117 = sphi 0, %s116
      %s131 = sphi 0, %s117
      %s135 = sphi 0, %s135
      %s137 = sphi 0, %s135
      %s138 = sphi 0, %s137
      %s152 = sphi 0, %s138
      %s156 = sphi 0, %s156
      %s158 = sphi 0, %s156
      %s159 = sphi 0, %s158
      %s173 = sphi 0, %s159
      %s177 = sphi 0, %s177
      %s179 = sphi 0, %s177
      %s180 = sphi 0, %s179
      %s194 = sphi 0, %s180
      %s198 = sphi 0, %s198
      %s200 = sphi 0, %s198
      %s201 = sphi 0, %s200
      %s215 = sphi 0, %s201
      %s219 = sphi 0, %s219
      %s221 = sphi 0, %s219
      %s222 = sphi 0, %s221
      %s236 = sphi 0, %s222
      %s240 = sphi 0, %s240
      %s242 = sphi 0, %s240
      %s243 = sphi 0, %s242
      %s257 = sphi 0, %s243
      %s261 = sphi 0, %s261
      %s263 = sphi 0, %s261
      %s264 = sphi 0, %s263
      %s278 = sphi 0, %s264
      %s282 = sphi 0, %s282
      %s284 = sphi 0, %s282
      %s285 = sphi 0, %s284
      %s299 = sphi 0, %s285
      %s303 = sphi 0, %s303
      %s305 = sphi 0, %s303
      %s306 = sphi 0, %s305
      %s320 = sphi 0, %s306
      %s324 = sphi 0, %s324
      %s326 = sphi 0, %s324
      %s327 = sphi 0, %s326
      %s341 = sphi 0, %s327
      %s345 = sphi 0, %s345
      %s347 = sphi 0, %s345
      %s348 = sphi 0, %s347
      %s362 = sphi 0, %s348
      %s366 = sphi 0, %s366
      %s368 = sphi 0, %s366
      %s369 = sphi 0, %s368
      %s383 = sphi 0, %s369
      %s387 = sphi 0, %s387
      %s389 = sphi 0, %s387
      %s390 = sphi 0, %s389
      %s404 = sphi 0, %s390
      %s410 = sphi 0, %s412
      %s413 = sphi 0, %s410
      %s414 = sphi 0, %s413
      %s430 = sphi 0, %s414
    $region4: #{tpu_custom_call.1} parent=1 // loop_header_branch
      %36 = sbr.rel (%p34) target = $region8
    $region5: #{tpu_custom_call.1} parent=1 // loop_body
      %s38 = ssub.s32 %s33, 1
      %s39 = ssub.s32 %s33, 2
      %s40 = sadd.s32 %s33, 1
      %s41 = ssub.s32 %s33, %s40
      %p42 = scmp.eq.s32.totalorder %s41, 0
      %s44 = sadd.s32 %s43, 1
      %s45 = scalar_select %p42, %s43, %s44
      %p48 = pneg %p42
      %p49 = scmp.eq.s32.totalorder %s33, 1
      %p50 = por %p48, %p49
      %p51 = scmp.ne.s32.totalorder %s43, %s46
      %p52 = scmp.eq.s32.totalorder %s33, 0
      %p53 = por %p51, %p52
      %p54 = scmp.ne.s32.totalorder %s43, %s46
      %p55 = scmp.eq.s32.totalorder %s38, 1
      %p56 = por %p54, %p55
      %p57 = scmp.ne.s32.totalorder %s46, %s47
      %p58 = scmp.eq.s32.totalorder %s38, 0
      %p59 = por %p57, %p58
      %p60 = scmp.ne.s32.totalorder %s46, %s47
      %p61 = scmp.eq.s32.totalorder %s39, 1
      %p62 = por %p60, %p61
      %p64 = scmp.ne.s32.totalorder %s47, %s63
      %p65 = scmp.eq.s32.totalorder %s39, 0
      %p66 = por %p64, %p65
      %s67 = ssub.s32 %s33, %s40
      %p68 = scmp.eq.s32.totalorder %s67, 0
      %s70 = sadd.s32 %s69, 1
      %s71 = scalar_select %p68, %s69, %s70
      %p74 = pneg %p68
      %p75 = scmp.eq.s32.totalorder %s33, 1
      %p76 = por %p74, %p75
      %p77 = scmp.ne.s32.totalorder %s69, %s72
      %p78 = scmp.eq.s32.totalorder %s33, 0
      %p79 = por %p77, %p78
      %p80 = scmp.ne.s32.totalorder %s69, %s72
      %p81 = scmp.eq.s32.totalorder %s38, 1
      %p82 = por %p80, %p81
      %p83 = scmp.ne.s32.totalorder %s72, %s73
      %p84 = scmp.eq.s32.totalorder %s38, 0
      %p85 = por %p83, %p84
      %p86 = scmp.ne.s32.totalorder %s72, %s73
      %p87 = scmp.eq.s32.totalorder %s39, 1
      %p88 = por %p86, %p87
      %p90 = scmp.ne.s32.totalorder %s73, %s89
      %p91 = scmp.eq.s32.totalorder %s39, 0
      %p92 = por %p90, %p91
      %s94 = sadd.s32 %s93, 1
      %p97 = scmp.eq.s32.totalorder %s33, 1
      %p98 = scmp.ne.s32.totalorder %s93, %s95
      %p99 = scmp.eq.s32.totalorder %s33, 0
      %p100 = por %p98, %p99
      %p101 = scmp.ne.s32.totalorder %s93, %s95
      %p102 = scmp.eq.s32.totalorder %s38, 1
      %p103 = por %p101, %p102
      %p104 = scmp.ne.s32.totalorder %s95, %s96
      %p105 = scmp.eq.s32.totalorder %s38, 0
      %p106 = por %p104, %p105
      %p107 = scmp.ne.s32.totalorder %s95, %s96
      %p108 = scmp.eq.s32.totalorder %s39, 1
      %p109 = por %p107, %p108
      %p111 = scmp.ne.s32.totalorder %s96, %s110
      %p112 = scmp.eq.s32.totalorder %s39, 0
      %p113 = por %p111, %p112
      %s115 = sadd.s32 %s114, 1
      %p118 = scmp.eq.s32.totalorder %s33, 1
      %p119 = scmp.ne.s32.totalorder %s114, %s116
      %p120 = scmp.eq.s32.totalorder %s33, 0
      %p121 = por %p119, %p120
      %p122 = scmp.ne.s32.totalorder %s114, %s116
      %p123 = scmp.eq.s32.totalorder %s38, 1
      %p124 = por %p122, %p123
      %p125 = scmp.ne.s32.totalorder %s116, %s117
      %p126 = scmp.eq.s32.totalorder %s38, 0
      %p127 = por %p125, %p126
      %p128 = scmp.ne.s32.totalorder %s116, %s117
      %p129 = scmp.eq.s32.totalorder %s39, 1
      %p130 = por %p128, %p129
      %p132 = scmp.ne.s32.totalorder %s117, %s131
      %p133 = scmp.eq.s32.totalorder %s39, 0
      %p134 = por %p132, %p133
      %s136 = sadd.s32 %s135, 1
      %p139 = scmp.eq.s32.totalorder %s33, 1
      %p140 = scmp.ne.s32.totalorder %s135, %s137
      %p141 = scmp.eq.s32.totalorder %s33, 0
      %p142 = por %p140, %p141
      %p143 = scmp.ne.s32.totalorder %s135, %s137
      %p144 = scmp.eq.s32.totalorder %s38, 1
      %p145 = por %p143, %p144
      %p146 = scmp.ne.s32.totalorder %s137, %s138
      %p147 = scmp.eq.s32.totalorder %s38, 0
      %p148 = por %p146, %p147
      %p149 = scmp.ne.s32.totalorder %s137, %s138
      %p150 = scmp.eq.s32.totalorder %s39, 1
      %p151 = por %p149, %p150
      %p153 = scmp.ne.s32.totalorder %s138, %s152
      %p154 = scmp.eq.s32.totalorder %s39, 0
      %p155 = por %p153, %p154
      %s157 = sadd.s32 %s156, 1
      %p160 = scmp.eq.s32.totalorder %s33, 1
      %p161 = scmp.ne.s32.totalorder %s156, %s158
      %p162 = scmp.eq.s32.totalorder %s33, 0
      %p163 = por %p161, %p162
      %p164 = scmp.ne.s32.totalorder %s156, %s158
      %p165 = scmp.eq.s32.totalorder %s38, 1
      %p166 = por %p164, %p165
      %p167 = scmp.ne.s32.totalorder %s158, %s159
      %p168 = scmp.eq.s32.totalorder %s38, 0
      %p169 = por %p167, %p168
      %p170 = scmp.ne.s32.totalorder %s158, %s159
      %p171 = scmp.eq.s32.totalorder %s39, 1
      %p172 = por %p170, %p171
      %p174 = scmp.ne.s32.totalorder %s159, %s173
      %p175 = scmp.eq.s32.totalorder %s39, 0
      %p176 = por %p174, %p175
      %s178 = sadd.s32 %s177, 1
      %p181 = scmp.eq.s32.totalorder %s33, 1
      %p182 = scmp.ne.s32.totalorder %s177, %s179
      %p183 = scmp.eq.s32.totalorder %s33, 0
      %p184 = por %p182, %p183
      %p185 = scmp.ne.s32.totalorder %s177, %s179
      %p186 = scmp.eq.s32.totalorder %s38, 1
      %p187 = por %p185, %p186
      %p188 = scmp.ne.s32.totalorder %s179, %s180
      %p189 = scmp.eq.s32.totalorder %s38, 0
      %p190 = por %p188, %p189
      %p191 = scmp.ne.s32.totalorder %s179, %s180
      %p192 = scmp.eq.s32.totalorder %s39, 1
      %p193 = por %p191, %p192
      %p195 = scmp.ne.s32.totalorder %s180, %s194
      %p196 = scmp.eq.s32.totalorder %s39, 0
      %p197 = por %p195, %p196
      %s199 = sadd.s32 %s198, 1
      %p202 = scmp.eq.s32.totalorder %s33, 1
      %p203 = scmp.ne.s32.totalorder %s198, %s200
      %p204 = scmp.eq.s32.totalorder %s33, 0
      %p205 = por %p203, %p204
      %p206 = scmp.ne.s32.totalorder %s198, %s200
      %p207 = scmp.eq.s32.totalorder %s38, 1
      %p208 = por %p206, %p207
      %p209 = scmp.ne.s32.totalorder %s200, %s201
      %p210 = scmp.eq.s32.totalorder %s38, 0
      %p211 = por %p209, %p210
      %p212 = scmp.ne.s32.totalorder %s200, %s201
      %p213 = scmp.eq.s32.totalorder %s39, 1
      %p214 = por %p212, %p213
      %p216 = scmp.ne.s32.totalorder %s201, %s215
      %p217 = scmp.eq.s32.totalorder %s39, 0
      %p218 = por %p216, %p217
      %s220 = sadd.s32 %s219, 1
      %p223 = scmp.eq.s32.totalorder %s33, 1
      %p224 = scmp.ne.s32.totalorder %s219, %s221
      %p225 = scmp.eq.s32.totalorder %s33, 0
      %p226 = por %p224, %p225
      %p227 = scmp.ne.s32.totalorder %s219, %s221
      %p228 = scmp.eq.s32.totalorder %s38, 1
      %p229 = por %p227, %p228
      %p230 = scmp.ne.s32.totalorder %s221, %s222
      %p231 = scmp.eq.s32.totalorder %s38, 0
      %p232 = por %p230, %p231
      %p233 = scmp.ne.s32.totalorder %s221, %s222
      %p234 = scmp.eq.s32.totalorder %s39, 1
      %p235 = por %p233, %p234
      %p237 = scmp.ne.s32.totalorder %s222, %s236
      %p238 = scmp.eq.s32.totalorder %s39, 0
      %p239 = por %p237, %p238
      %s241 = sadd.s32 %s240, 1
      %p244 = scmp.eq.s32.totalorder %s33, 1
      %p245 = scmp.ne.s32.totalorder %s240, %s242
      %p246 = scmp.eq.s32.totalorder %s33, 0
      %p247 = por %p245, %p246
      %p248 = scmp.ne.s32.totalorder %s240, %s242
      %p249 = scmp.eq.s32.totalorder %s38, 1
      %p250 = por %p248, %p249
      %p251 = scmp.ne.s32.totalorder %s242, %s243
      %p252 = scmp.eq.s32.totalorder %s38, 0
      %p253 = por %p251, %p252
      %p254 = scmp.ne.s32.totalorder %s242, %s243
      %p255 = scmp.eq.s32.totalorder %s39, 1
      %p256 = por %p254, %p255
      %p258 = scmp.ne.s32.totalorder %s243, %s257
      %p259 = scmp.eq.s32.totalorder %s39, 0
      %p260 = por %p258, %p259
      %s262 = sadd.s32 %s261, 1
      %p265 = scmp.eq.s32.totalorder %s33, 1
      %p266 = scmp.ne.s32.totalorder %s261, %s263
      %p267 = scmp.eq.s32.totalorder %s33, 0
      %p268 = por %p266, %p267
      %p269 = scmp.ne.s32.totalorder %s261, %s263
      %p270 = scmp.eq.s32.totalorder %s38, 1
      %p271 = por %p269, %p270
      %p272 = scmp.ne.s32.totalorder %s263, %s264
      %p273 = scmp.eq.s32.totalorder %s38, 0
      %p274 = por %p272, %p273
      %p275 = scmp.ne.s32.totalorder %s263, %s264
      %p276 = scmp.eq.s32.totalorder %s39, 1
      %p277 = por %p275, %p276
      %p279 = scmp.ne.s32.totalorder %s264, %s278
      %p280 = scmp.eq.s32.totalorder %s39, 0
      %p281 = por %p279, %p280
      %s283 = sadd.s32 %s282, 1
      %p286 = scmp.eq.s32.totalorder %s33, 1
      %p287 = scmp.ne.s32.totalorder %s282, %s284
      %p288 = scmp.eq.s32.totalorder %s33, 0
      %p289 = por %p287, %p288
      %p290 = scmp.ne.s32.totalorder %s282, %s284
      %p291 = scmp.eq.s32.totalorder %s38, 1
      %p292 = por %p290, %p291
      %p293 = scmp.ne.s32.totalorder %s284, %s285
      %p294 = scmp.eq.s32.totalorder %s38, 0
      %p295 = por %p293, %p294
      %p296 = scmp.ne.s32.totalorder %s284, %s285
      %p297 = scmp.eq.s32.totalorder %s39, 1
      %p298 = por %p296, %p297
      %p300 = scmp.ne.s32.totalorder %s285, %s299
      %p301 = scmp.eq.s32.totalorder %s39, 0
      %p302 = por %p300, %p301
      %s304 = sadd.s32 %s303, 1
      %p307 = scmp.eq.s32.totalorder %s33, 1
      %p308 = scmp.ne.s32.totalorder %s303, %s305
      %p309 = scmp.eq.s32.totalorder %s33, 0
      %p310 = por %p308, %p309
      %p311 = scmp.ne.s32.totalorder %s303, %s305
      %p312 = scmp.eq.s32.totalorder %s38, 1
      %p313 = por %p311, %p312
      %p314 = scmp.ne.s32.totalorder %s305, %s306
      %p315 = scmp.eq.s32.totalorder %s38, 0
      %p316 = por %p314, %p315
      %p317 = scmp.ne.s32.totalorder %s305, %s306
      %p318 = scmp.eq.s32.totalorder %s39, 1
      %p319 = por %p317, %p318
      %p321 = scmp.ne.s32.totalorder %s306, %s320
      %p322 = scmp.eq.s32.totalorder %s39, 0
      %p323 = por %p321, %p322
      %s325 = sadd.s32 %s324, 1
      %p328 = scmp.eq.s32.totalorder %s33, 1
      %p329 = scmp.ne.s32.totalorder %s324, %s326
      %p330 = scmp.eq.s32.totalorder %s33, 0
      %p331 = por %p329, %p330
      %p332 = scmp.ne.s32.totalorder %s324, %s326
      %p333 = scmp.eq.s32.totalorder %s38, 1
      %p334 = por %p332, %p333
      %p335 = scmp.ne.s32.totalorder %s326, %s327
      %p336 = scmp.eq.s32.totalorder %s38, 0
      %p337 = por %p335, %p336
      %p338 = scmp.ne.s32.totalorder %s326, %s327
      %p339 = scmp.eq.s32.totalorder %s39, 1
      %p340 = por %p338, %p339
      %p342 = scmp.ne.s32.totalorder %s327, %s341
      %p343 = scmp.eq.s32.totalorder %s39, 0
      %p344 = por %p342, %p343
      %s346 = sadd.s32 %s345, 1
      %p349 = scmp.eq.s32.totalorder %s33, 1
      %p350 = scmp.ne.s32.totalorder %s345, %s347
      %p351 = scmp.eq.s32.totalorder %s33, 0
      %p352 = por %p350, %p351
      %p353 = scmp.ne.s32.totalorder %s345, %s347
      %p354 = scmp.eq.s32.totalorder %s38, 1
      %p355 = por %p353, %p354
      %p356 = scmp.ne.s32.totalorder %s347, %s348
      %p357 = scmp.eq.s32.totalorder %s38, 0
      %p358 = por %p356, %p357
      %p359 = scmp.ne.s32.totalorder %s347, %s348
      %p360 = scmp.eq.s32.totalorder %s39, 1
      %p361 = por %p359, %p360
      %p363 = scmp.ne.s32.totalorder %s348, %s362
      %p364 = scmp.eq.s32.totalorder %s39, 0
      %p365 = por %p363, %p364
      %s367 = sadd.s32 %s366, 1
      %p370 = scmp.eq.s32.totalorder %s33, 1
      %p371 = scmp.ne.s32.totalorder %s366, %s368
      %p372 = scmp.eq.s32.totalorder %s33, 0
      %p373 = por %p371, %p372
      %p374 = scmp.ne.s32.totalorder %s366, %s368
      %p375 = scmp.eq.s32.totalorder %s38, 1
      %p376 = por %p374, %p375
      %p377 = scmp.ne.s32.totalorder %s368, %s369
      %p378 = scmp.eq.s32.totalorder %s38, 0
      %p379 = por %p377, %p378
      %p380 = scmp.ne.s32.totalorder %s368, %s369
      %p381 = scmp.eq.s32.totalorder %s39, 1
      %p382 = por %p380, %p381
      %p384 = scmp.ne.s32.totalorder %s369, %s383
      %p385 = scmp.eq.s32.totalorder %s39, 0
      %p386 = por %p384, %p385
      %s388 = sadd.s32 %s387, 1
      %p391 = scmp.eq.s32.totalorder %s33, 1
      %p392 = scmp.ne.s32.totalorder %s387, %s389
      %p393 = scmp.eq.s32.totalorder %s33, 0
      %p394 = por %p392, %p393
      %p395 = scmp.ne.s32.totalorder %s387, %s389
      %p396 = scmp.eq.s32.totalorder %s38, 1
      %p397 = por %p395, %p396
      %p398 = scmp.ne.s32.totalorder %s389, %s390
      %p399 = scmp.eq.s32.totalorder %s38, 0
      %p400 = por %p398, %p399
      %p401 = scmp.ne.s32.totalorder %s389, %s390
      %p402 = scmp.eq.s32.totalorder %s39, 1
      %p403 = por %p401, %p402
      %p405 = scmp.ne.s32.totalorder %s390, %s404
      %p406 = scmp.eq.s32.totalorder %s39, 0
      %p407 = por %p405, %p406
      %s408 = ssub.s32 %s33, %s40
      %p409 = scmp.eq.s32.totalorder %s408, 0
      %s411 = sadd.s32 %s410, 1
      %s412 = scalar_select %p409, %s410, %s411
      %p415 = pneg %p409
      %p416 = scmp.eq.s32.totalorder %s33, 1
      %p417 = por %p415, %p416
      %p418 = scmp.ne.s32.totalorder %s410, %s413
      %p419 = scmp.eq.s32.totalorder %s33, 0
      %p420 = por %p418, %p419
      %p421 = scmp.ne.s32.totalorder %s410, %s413
      %p422 = scmp.eq.s32.totalorder %s38, 1
      %p423 = por %p421, %p422
      %p424 = scmp.ne.s32.totalorder %s413, %s414
      %p425 = scmp.eq.s32.totalorder %s38, 0
      %p426 = por %p424, %p425
      %p427 = scmp.ne.s32.totalorder %s413, %s414
      %p428 = scmp.eq.s32.totalorder %s39, 1
      %p429 = por %p427, %p428
      %p431 = scmp.ne.s32.totalorder %s414, %s430
      %p432 = scmp.eq.s32.totalorder %s39, 0
      %p433 = por %p431, %p432
      %p434 = scmp.le.s32.totalorder 1, %s33
      %p435 = scmp.lt.s32.totalorder %s33, 3
      %p436 = pnand %p434, %p435
      %p437 = pneg %p436
      // Predicated region
      $region9: #{tpu_custom_call.1} parent=5 // pred_check
        _
      $region10: #{tpu_custom_call.1} parent=5 // pred_check_branch
        %439 = sbr.rel (%p436) target = $region12
      $region11: #{tpu_custom_call.1} parent=5 // pred_region
        %s440 = ssub.s32 %s33, 1
        // Predicated region
        $region13: #{tpu_custom_call.1} parent=11 // pred_check
          %p441 = pneg %p106
        $region14: #{tpu_custom_call.1} parent=11 // pred_check_branch
          %443 = sbr.rel (%p441) target = $region16
        $region15: #{tpu_custom_call.1} parent=11 // pred_region
          %s445 = ssub.s32 128, 128
          %446 = vsyncadd [#allocation6], %s445
          %s448 = sshll.u32 [#allocation7], 4
          %s449 = int_to_ptr.vmem [resolvable:$true] %s448
          %451 = dma.hbm_to_vmem [thread:$0]  %s2, 128, %s449, [#allocation6]
        $region16: #{tpu_custom_call.1} parent=11 // pred_fallthru
          _
        // Predicated region
        $region17: #{tpu_custom_call.1} parent=11 // pred_check
          %p452 = pneg %p127
        $region18: #{tpu_custom_call.1} parent=11 // pred_check_branch
          %454 = sbr.rel (%p452) target = $region20
        $region19: #{tpu_custom_call.1} parent=11 // pred_region
          _
        $region20: #{tpu_custom_call.1} parent=11 // pred_fallthru
          _
        // Predicated region
        $region21: #{tpu_custom_call.1} parent=11 // pred_check
          %p455 = pneg %p148
        $region22: #{tpu_custom_call.1} parent=11 // pred_check_branch
          %457 = sbr.rel (%p455) target = $region24
        $region23: #{tpu_custom_call.1} parent=11 // pred_region
          _
        $region24: #{tpu_custom_call.1} parent=11 // pred_fallthru
          _
        // Predicated region
        $region25: #{tpu_custom_call.1} parent=11 // pred_check
          %p458 = pneg %p169
        $region26: #{tpu_custom_call.1} parent=11 // pred_check_branch
          %460 = sbr.rel (%p458) target = $region28
        $region27: #{tpu_custom_call.1} parent=11 // pred_region
          _
        $region28: #{tpu_custom_call.1} parent=11 // pred_fallthru
          _
        // Predicated region
        $region29: #{tpu_custom_call.1} parent=11 // pred_check
          %p461 = pneg %p190
        $region30: #{tpu_custom_call.1} parent=11 // pred_check_branch
          %463 = sbr.rel (%p461) target = $region32
        $region31: #{tpu_custom_call.1} parent=11 // pred_region
          _
        $region32: #{tpu_custom_call.1} parent=11 // pred_fallthru
          _
        // Predicated region
        $region33: #{tpu_custom_call.1} parent=11 // pred_check
          %p464 = pneg %p211
        $region34: #{tpu_custom_call.1} parent=11 // pred_check_branch
          %466 = sbr.rel (%p464) target = $region36
        $region35: #{tpu_custom_call.1} parent=11 // pred_region
          _
        $region36: #{tpu_custom_call.1} parent=11 // pred_fallthru
          _
        // Predicated region
        $region37: #{tpu_custom_call.1} parent=11 // pred_check
          %p467 = pneg %p232
        $region38: #{tpu_custom_call.1} parent=11 // pred_check_branch
          %469 = sbr.rel (%p467) target = $region40
        $region39: #{tpu_custom_call.1} parent=11 // pred_region
          _
        $region40: #{tpu_custom_call.1} parent=11 // pred_fallthru
          _
        // Predicated region
        $region41: #{tpu_custom_call.1} parent=11 // pred_check
          %p470 = pneg %p253
        $region42: #{tpu_custom_call.1} parent=11 // pred_check_branch
          %472 = sbr.rel (%p470) target = $region44
        $region43: #{tpu_custom_call.1} parent=11 // pred_region
          _
        $region44: #{tpu_custom_call.1} parent=11 // pred_fallthru
          _
        // Predicated region
        $region45: #{tpu_custom_call.1} parent=11 // pred_check
          %p473 = pneg %p274
        $region46: #{tpu_custom_call.1} parent=11 // pred_check_branch
          %475 = sbr.rel (%p473) target = $region48
        $region47: #{tpu_custom_call.1} parent=11 // pred_region
          _
        $region48: #{tpu_custom_call.1} parent=11 // pred_fallthru
          _
        // Predicated region
        $region49: #{tpu_custom_call.1} parent=11 // pred_check
          %p476 = pneg %p295
        $region50: #{tpu_custom_call.1} parent=11 // pred_check_branch
          %478 = sbr.rel (%p476) target = $region52
        $region51: #{tpu_custom_call.1} parent=11 // pred_region
          %s480 = ssub.s32 512, 512
          %481 = vsyncadd [#allocation9], %s480
          %s482 = sshll.u32 [#allocation8], 4
          %s483 = int_to_ptr.vmem [resolvable:$true] %s482
          %488 = dma.hbm_to_vmem [thread:$0]  %s11, 512, %s483, [#allocation9], 64, 64, 4
        $region52: #{tpu_custom_call.1} parent=11 // pred_fallthru
          _
        // Predicated region
        $region53: #{tpu_custom_call.1} parent=11 // pred_check
          %p489 = pneg %p316
        $region54: #{tpu_custom_call.1} parent=11 // pred_check_branch
          %491 = sbr.rel (%p489) target = $region56
        $region55: #{tpu_custom_call.1} parent=11 // pred_region
          _
        $region56: #{tpu_custom_call.1} parent=11 // pred_fallthru
          _
        // Predicated region
        $region57: #{tpu_custom_call.1} parent=11 // pred_check
          %p492 = pneg %p337
        $region58: #{tpu_custom_call.1} parent=11 // pred_check_branch
          %494 = sbr.rel (%p492) target = $region60
        $region59: #{tpu_custom_call.1} parent=11 // pred_region
          _
        $region60: #{tpu_custom_call.1} parent=11 // pred_fallthru
          _
        // Predicated region
        $region61: #{tpu_custom_call.1} parent=11 // pred_check
          %p495 = pneg %p358
        $region62: #{tpu_custom_call.1} parent=11 // pred_check_branch
          %497 = sbr.rel (%p495) target = $region64
        $region63: #{tpu_custom_call.1} parent=11 // pred_region
          _
        $region64: #{tpu_custom_call.1} parent=11 // pred_fallthru
          _
        // Predicated region
        $region65: #{tpu_custom_call.1} parent=11 // pred_check
          %p498 = pneg %p379
        $region66: #{tpu_custom_call.1} parent=11 // pred_check_branch
          %500 = sbr.rel (%p498) target = $region68
        $region67: #{tpu_custom_call.1} parent=11 // pred_region
          _
        $region68: #{tpu_custom_call.1} parent=11 // pred_fallthru
          _
        // Predicated region
        $region69: #{tpu_custom_call.1} parent=11 // pred_check
          %p501 = pneg %p400
        $region70: #{tpu_custom_call.1} parent=11 // pred_check_branch
          %503 = sbr.rel (%p501) target = $region72
        $region71: #{tpu_custom_call.1} parent=11 // pred_region
          _
        $region72: #{tpu_custom_call.1} parent=11 // pred_fallthru
          _
      $region12: #{tpu_custom_call.1} parent=5 // pred_fallthru
        _
      %p504 = scmp.lt.s32.totalorder %s33, 2
      // Predicated region
      $region73: #{tpu_custom_call.1} parent=5 // pred_check
        %p505 = pneg %p504
      $region74: #{tpu_custom_call.1} parent=5 // pred_check_branch
        %507 = sbr.rel (%p505) target = $region76
      $region75: #{tpu_custom_call.1} parent=5 // pred_region
        // Predicated region
        $region77: #{tpu_custom_call.1} parent=75 // pred_check
          %p508 = pneg %p53
        $region78: #{tpu_custom_call.1} parent=75 // pred_check_branch
          %510 = sbr.rel (%p508) target = $region80
        $region79: #{tpu_custom_call.1} parent=75 // pred_region
          %s511 = sand.u32 %s43, 1
          %s512 = scalar_lea.sflag [#allocation3], %s511
          %s513 = sand.u32 %s43, 1
          %s514 = smul.addr %s513, 8
          %s515 = scalar_lea.vmem [#allocation2], %s514
          %s517 = ssub.s32 128, 128
          %518 = vsyncadd %s512, %s517
          %s519 = smul.addr %s33, 128
          %s520 = scalar_lea.hbm %s0, %s519
          %s522 = sshll.u32 %s515, 4
          %s523 = int_to_ptr.vmem [resolvable:$true] %s522
          %525 = dma.hbm_to_vmem [thread:$0]  %s520, 128, %s523, %s512
        $region80: #{tpu_custom_call.1} parent=75 // pred_fallthru
          _
        // Predicated region
        $region81: #{tpu_custom_call.1} parent=75 // pred_check
          %p526 = pneg %p79
        $region82: #{tpu_custom_call.1} parent=75 // pred_check_branch
          %528 = sbr.rel (%p526) target = $region84
        $region83: #{tpu_custom_call.1} parent=75 // pred_region
          %s529 = sand.u32 %s33, 1
          %s530 = scalar_lea.sflag [#allocation6], %s529
          %s531 = sand.u32 %s69, 1
          %s532 = smul.addr %s531, 8
          %s533 = scalar_lea.vmem [#allocation5], %s532
          %s535 = ssub.s32 128, 128
          %536 = vsyncadd %s530, %s535
          %s537 = smul.addr %s33, 128
          %s538 = scalar_lea.hbm %s1, %s537
          %s540 = sshll.u32 %s533, 4
          %s541 = int_to_ptr.vmem [resolvable:$true] %s540
          %543 = dma.hbm_to_vmem [thread:$0]  %s538, 128, %s541, %s530
        $region84: #{tpu_custom_call.1} parent=75 // pred_fallthru
          _
      $region76: #{tpu_custom_call.1} parent=5 // pred_fallthru
        _
      %p544 = scmp.le.s32.totalorder 1, %s33
      %p545 = scmp.lt.s32.totalorder %s33, 3
      %p546 = pnand %p544, %p545
      %p547 = pneg %p546
      // Predicated region
      $region85: #{tpu_custom_call.1} parent=5 // pred_check
        _
      $region86: #{tpu_custom_call.1} parent=5 // pred_check_branch
        %549 = sbr.rel (%p546) target = $region88
      $region87: #{tpu_custom_call.1} parent=5 // pred_region
        %s550 = ssub.s32 %s33, 1
        %s551 = sand.u32 %s46, 1
        %s552 = scalar_lea.sflag [#allocation3], %s551
        %s553 = sand.u32 %s46, 1
        %s554 = smul.addr %s553, 8
        %s555 = scalar_lea.vmem [#allocation2], %s554
        // Predicated region
        $region89: #{tpu_custom_call.1} parent=87 // pred_check
          %p556 = pneg %p59
        $region90: #{tpu_custom_call.1} parent=87 // pred_check_branch
          %558 = sbr.rel (%p556) target = $region92
        $region91: #{tpu_custom_call.1} parent=87 // pred_region
          %559 = dma.done %s552, 128
        $region92: #{tpu_custom_call.1} parent=87 // pred_fallthru
          _
        %s560 = sand.u32 %s38, 1
        %s561 = scalar_lea.sflag [#allocation6], %s560
        %s562 = sand.u32 %s72, 1
        %s563 = smul.addr %s562, 8
        %s564 = scalar_lea.vmem [#allocation5], %s563
        // Predicated region
        $region93: #{tpu_custom_call.1} parent=87 // pred_check
          %p565 = pneg %p85
        $region94: #{tpu_custom_call.1} parent=87 // pred_check_branch
          %567 = sbr.rel (%p565) target = $region96
        $region95: #{tpu_custom_call.1} parent=87 // pred_region
          %568 = dma.done %s561, 128
        $region96: #{tpu_custom_call.1} parent=87 // pred_fallthru
          _
        // Predicated region
        $region97: #{tpu_custom_call.1} parent=87 // pred_check
          %p569 = pneg %p106
        $region98: #{tpu_custom_call.1} parent=87 // pred_check_branch
          %571 = sbr.rel (%p569) target = $region100
        $region99: #{tpu_custom_call.1} parent=87 // pred_region
          %572 = dma.done [#allocation6], 128
        $region100: #{tpu_custom_call.1} parent=87 // pred_fallthru
          _
        // Predicated region
        $region101: #{tpu_custom_call.1} parent=87 // pred_check
          %p573 = pneg %p295
        $region102: #{tpu_custom_call.1} parent=87 // pred_check_branch
          %575 = sbr.rel (%p573) target = $region104
        $region103: #{tpu_custom_call.1} parent=87 // pred_region
          %576 = dma.done [#allocation9], 512
        $region104: #{tpu_custom_call.1} parent=87 // pred_fallthru
          _
        %s577 = sand.u32 %s46, 1
        %s578 = scalar_lea.sflag [#allocation3], %s577
        %s579 = sand.u32 %s46, 1
        %s580 = smul.addr %s579, 8
        %s581 = scalar_lea.vmem [#allocation2], %s580
        %p582 = pneg %p59
        %p583 = pneg %p56
        %s584 = sand.u32 %s38, 1
        %s585 = scalar_lea.sflag [#allocation6], %s584
        %s586 = sand.u32 %s72, 1
        %s587 = smul.addr %s586, 8
        %s588 = scalar_lea.vmem [#allocation5], %s587
        %p589 = pneg %p85
        %p590 = pneg %p82
        %p591 = pneg %p106
        %p592 = pneg %p103
        %p593 = pneg %p127
        %p594 = pneg %p124
        %p595 = pneg %p148
        %p596 = pneg %p145
        %p597 = pneg %p169
        %p598 = pneg %p166
        %p599 = pneg %p190
        %p600 = pneg %p187
        %p601 = pneg %p211
        %p602 = pneg %p208
        %p603 = pneg %p232
        %p604 = pneg %p229
        %p605 = pneg %p253
        %p606 = pneg %p250
        %p607 = pneg %p274
        %p608 = pneg %p271
        %p609 = pneg %p295
        %p610 = pneg %p292
        %p611 = pneg %p316
        %p612 = pneg %p313
        %p613 = pneg %p337
        %p614 = pneg %p334
        %p615 = pneg %p358
        %p616 = pneg %p355
        %p617 = pneg %p379
        %p618 = pneg %p376
        %p619 = pneg %p400
        %p620 = pneg %p397
        %p621 = pneg %p426
        %p622 = pneg %p423
        %s623 = sand.u32 %s413, 1
        %s624 = scalar_lea.sflag [#allocation4], %s623
        %s625 = sand.u32 %s413, 1
        %s626 = smul.addr %s625, 8
        %s627 = scalar_lea.vmem [#allocation10], %s626
        %v629 = vld [vmem:[#allocation7] sm:$0xff]
        %v630 = vld [vmem:[%s555] sm:$0xff]
        %v631 = vadd.f32 %v630, %v629
        %v632 = vld [vmem:[%s564] sm:$0xff]
        %v633 = vadd.f32 %v632, %v629
        %v634 = vpack.c.bf16 %v633, %v633
        %v635 = vlaneseq
        %v636 = vshrl.u32 %v635, 7
        %v637 = vlaneseq
        %v638 = vand.u32 %v637, 127
        %vm639 = vcmp.lt.s32.totalorder %v638, %v636
        %v640 = vsel %vm639, 0.0, -1e+32
        %vm641 = vcmp.ne.s32.totalorder %v636, 0
        %v642 = vsel %vm641, 1, 0
        %v643 = vcvt.s32.f32 %v642
        loop: start=0, step=1, limit=2
        $region105: #{tpu_custom_call.1} parent=87 // loop_pre_header
          _
        $region106: #{tpu_custom_call.1} parent=87 // loop_header
          %s645 = sphi 0, %s649
          %p646 = scmp.ge.s32.totalorder %s645, 2
          %v650 = vphi %v631, %v1785
        $region107: #{tpu_custom_call.1} parent=87 // loop_header_branch
          %648 = sbr.rel (%p646) target = $region111
        $region108: #{tpu_custom_call.1} parent=87 // loop_body
          %v651 = vpack.c.bf16 %v650, %v650
          %s652 = smul.u32 %s645, 4
          %s653 = smul.addr %s652, 4
          %s654 = scalar_lea.vmem %s3, %s653
          %v655 = vld [vmem:[%s654] sm:$0xf]
          %v656 = vld [vmem:[%s654 + $0x4] sm:$0xf]
          %v657 = vld [vmem:[%s654 + $0x8] sm:$0xf]
          %v658 = vld [vmem:[%s654 + $0xc] sm:$0xf]
          %s659 = scalar_lea.vmem %s4, %s645
          %v660 = vld [vmem:[%s659] sm:$0x1]
          %v662 = vlaneseq
          %v663 = vshrl.u32 %v662, 7
          %v664 = vsub.s32 0, %v663
          %v665 = vrot.slane %v660, %v664
          %v671 = vunpack.c.l.b16 %v655
          %v672 = vunpack.c.l.b16 %v656
          %v673 = vunpack.c.l.b16 %v657
          %v674 = vunpack.c.l.b16 %v658
          %v675 = vpack.c.b16 %v672, %v671
          %v676 = vpack.c.b16 %v674, %v673
          %vm679 = vcmask 261120
          %v681 = vsel %vm679, %v651, 0
          %683 = vmatprep.subr.bf16.mxu0 0
          %684 = vmatpush1.bf16.msra.mxu0 %v675
          %685 = vmatprep.subr.bf16.mxu0 0
          %686 = vmatpush1.bf16.msra.mxu0 %v676
          %687 = vmatprep.subr.bf16.mxu0 0
          %688 = vmatpush1.bf16.msra.mxu0 0
          %689 = vmatprep.subr.bf16.mxu0 0
          %690 = vmatpush1.bf16.msra.mxu0 0
          %691 = vmatprep.subr.bf16.mxu0 0
          %692 = vmatpush1.bf16.msra.mxu0 0
          %693 = vmatprep.subr.bf16.mxu0 0
          %694 = vmatpush1.bf16.msra.mxu0 0
          %695 = vmatprep.subr.bf16.mxu0 0
          %696 = vmatpush1.bf16.msra.mxu0 0
          %697 = vmatprep.subr.bf16.mxu0 0
          %698 = vmatpush1.bf16.msra.mxu0 0
          %699 = vmatprep.subr.bf16.mxu0 0
          %700 = vmatpush1.bf16.msra.mxu0 0
          %701 = vmatprep.subr.bf16.mxu0 0
          %702 = vmatpush1.bf16.msra.mxu0 0
          %703 = vmatprep.subr.bf16.mxu0 0
          %704 = vmatpush1.bf16.msra.mxu0 0
          %705 = vmatprep.subr.bf16.mxu0 0
          %706 = vmatpush1.bf16.msra.mxu0 0
          %707 = vmatprep.subr.bf16.mxu0 0
          %708 = vmatpush1.bf16.msra.mxu0 0
          %709 = vmatprep.subr.bf16.mxu0 0
          %710 = vmatpush1.bf16.msra.mxu0 0
          %711 = vmatprep.subr.bf16.mxu0 0
          %712 = vmatpush1.bf16.msra.mxu0 0
          %713 = vmatprep.subr.bf16.mxu0 0
          %714 = vmatpush1.bf16.msra.mxu0 0
          %715 = vmatprep.mubr.bf16.mxu0 0
          %716 = vmatmul.mubr.bf16.gmra.mrb[0].mxu0 %v681
          %v717 = vpop.f32.mrb[0].mxu0
          %v718 = vadd.f32 %v665, %v717
          %v719 = vpop.f32.mrb[0].mxu0
          %v720 = vpop.f32.mrb[0].mxu0
          %v721 = vpop.f32.mrb[0].mxu0
          %722 = vdwg.mxu0
          %s723 = smul.addr %s652, 4
          %s724 = scalar_lea.vmem %s5, %s723
          %v725 = vld [vmem:[%s724] sm:$0xf]
          %v726 = vld [vmem:[%s724 + $0x4] sm:$0xf]
          %v727 = vld [vmem:[%s724 + $0x8] sm:$0xf]
          %v728 = vld [vmem:[%s724 + $0xc] sm:$0xf]
          %s729 = scalar_lea.vmem %s6, %s645
          %v730 = vld [vmem:[%s729] sm:$0x1]
          %v732 = vlaneseq
          %v733 = vshrl.u32 %v732, 7
          %v734 = vsub.s32 0, %v733
          %v735 = vrot.slane %v730, %v734
          %v741 = vunpack.c.l.b16 %v725
          %v742 = vunpack.c.l.b16 %v726
          %v743 = vunpack.c.l.b16 %v727
          %v744 = vunpack.c.l.b16 %v728
          %v745 = vpack.c.b16 %v742, %v741
          %v746 = vpack.c.b16 %v744, %v743
          %v750 = vsel %vm679, %v634, 0
          %752 = vmatprep.subr.bf16.mxu0 0
          %753 = vmatpush1.bf16.msra.mxu0 %v745
          %754 = vmatprep.subr.bf16.mxu0 0
          %755 = vmatpush1.bf16.msra.mxu0 %v746
          %756 = vmatprep.subr.bf16.mxu0 0
          %757 = vmatpush1.bf16.msra.mxu0 0
          %758 = vmatprep.subr.bf16.mxu0 0
          %759 = vmatpush1.bf16.msra.mxu0 0
          %760 = vmatprep.subr.bf16.mxu0 0
          %761 = vmatpush1.bf16.msra.mxu0 0
          %762 = vmatprep.subr.bf16.mxu0 0
          %763 = vmatpush1.bf16.msra.mxu0 0
          %764 = vmatprep.subr.bf16.mxu0 0
          %765 = vmatpush1.bf16.msra.mxu0 0
          %766 = vmatprep.subr.bf16.mxu0 0
          %767 = vmatpush1.bf16.msra.mxu0 0
          %768 = vmatprep.subr.bf16.mxu0 0
          %769 = vmatpush1.bf16.msra.mxu0 0
          %770 = vmatprep.subr.bf16.mxu0 0
          %771 = vmatpush1.bf16.msra.mxu0 0
          %772 = vmatprep.subr.bf16.mxu0 0
          %773 = vmatpush1.bf16.msra.mxu0 0
          %774 = vmatprep.subr.bf16.mxu0 0
          %775 = vmatpush1.bf16.msra.mxu0 0
          %776 = vmatprep.subr.bf16.mxu0 0
          %777 = vmatpush1.bf16.msra.mxu0 0
          %778 = vmatprep.subr.bf16.mxu0 0
          %779 = vmatpush1.bf16.msra.mxu0 0
          %780 = vmatprep.subr.bf16.mxu0 0
          %781 = vmatpush1.bf16.msra.mxu0 0
          %782 = vmatprep.subr.bf16.mxu0 0
          %783 = vmatpush1.bf16.msra.mxu0 0
          %784 = vmatprep.mubr.bf16.mxu0 0
          %785 = vmatmul.mubr.bf16.gmra.mrb[0].mxu0 %v750
          %v786 = vpop.f32.mrb[0].mxu0
          %v787 = vadd.f32 %v735, %v786
          %v788 = vpop.f32.mrb[0].mxu0
          %v789 = vpop.f32.mrb[0].mxu0
          %v790 = vpop.f32.mrb[0].mxu0
          %791 = vdwg.mxu0
          %v792 = vmul.f32 %v718, 0.25
          %794 = vrot.lane.b32.xlu0 %v792, 112
          %v795 = vpop.permute.xlu0 %794
          %v797 = vcombine.high %v792, 0.0
          %v799 = vunpack.c.l.s4 1983009808
          %v800 = vunpack.c.0.s8 %v799
          %v801 = vlaneseq
          %v802 = vshrl.u32 %v801, 7
          %v803 = vsub.s32 %v800, %v802
          %v804 = vrot.slane %v792, %v803
          %v806 = vunpack.c.l.s4 1983009808
          %v807 = vunpack.c.0.s8 %v806
          %v808 = vlaneseq
          %v809 = vshrl.u32 %v808, 7
          %v810 = vsub.s32 %v807, %v809
          %v811 = vrot.slane %v797, %v810
          %v812 = vcombine.high %v795, 0.0
          %v814 = vunpack.c.l.s4 1983009808
          %v815 = vunpack.c.0.s8 %v814
          %v816 = vlaneseq
          %v817 = vshrl.u32 %v816, 7
          %v818 = vsub.s32 %v815, %v817
          %v819 = vrot.slane %v795, %v818
          %v821 = vunpack.c.l.s4 1983009808
          %v822 = vunpack.c.0.s8 %v821
          %v823 = vlaneseq
          %v824 = vshrl.u32 %v823, 7
          %v825 = vsub.s32 %v822, %v824
          %v826 = vrot.slane %v812, %v825
          %v827 = vcombine.low %v804, %v819
          %v828 = vcombine.high %v804, %v819
          %v830 = vunpack.c.l.s4 1934713408
          %v831 = vunpack.c.0.s8 %v830
          %v832 = vlaneseq
          %v833 = vshrl.u32 %v832, 7
          %v834 = vsub.s32 %v831, %v833
          %v835 = vrot.slane %v827, %v834
          %v837 = vunpack.c.l.s4 1934713408
          %v838 = vunpack.c.0.s8 %v837
          %v839 = vlaneseq
          %v840 = vshrl.u32 %v839, 7
          %v841 = vsub.s32 %v838, %v840
          %v842 = vrot.slane %v828, %v841
          %v843 = vcombine.low %v811, %v826
          %v844 = vcombine.high %v811, %v826
          %v846 = vunpack.c.l.s4 1934713408
          %v847 = vunpack.c.0.s8 %v846
          %v848 = vlaneseq
          %v849 = vshrl.u32 %v848, 7
          %v850 = vsub.s32 %v847, %v849
          %v851 = vrot.slane %v843, %v850
          %v853 = vunpack.c.l.s4 1934713408
          %v854 = vunpack.c.0.s8 %v853
          %v855 = vlaneseq
          %v856 = vshrl.u32 %v855, 7
          %v857 = vsub.s32 %v854, %v856
          %v858 = vrot.slane %v844, %v857
          %v859 = vcombine.high %v835, 0.0
          %v860 = vcombine.high %v842, 0.0
          %v861 = vcombine.high %v851, 0.0
          %v862 = vcombine.high %v858, 0.0
          %v863 = vcombine.low %v835, %v842
          %v865 = vunpack.c.l.s4 1983009808
          %v866 = vunpack.c.0.s8 %v865
          %v867 = vlaneseq
          %v868 = vshrl.u32 %v867, 7
          %v869 = vsub.s32 %v866, %v868
          %v870 = vrot.slane %v863, %v869
          %v871 = vcombine.low %v859, %v860
          %v873 = vunpack.c.l.s4 1983009808
          %v874 = vunpack.c.0.s8 %v873
          %v875 = vlaneseq
          %v876 = vshrl.u32 %v875, 7
          %v877 = vsub.s32 %v874, %v876
          %v878 = vrot.slane %v871, %v877
          %v879 = vcombine.low %v851, %v858
          %v881 = vunpack.c.l.s4 1983009808
          %v882 = vunpack.c.0.s8 %v881
          %v883 = vlaneseq
          %v884 = vshrl.u32 %v883, 7
          %v885 = vsub.s32 %v882, %v884
          %v886 = vrot.slane %v879, %v885
          %v887 = vcombine.low %v861, %v862
          %v889 = vunpack.c.l.s4 1983009808
          %v890 = vunpack.c.0.s8 %v889
          %v891 = vlaneseq
          %v892 = vshrl.u32 %v891, 7
          %v893 = vsub.s32 %v890, %v892
          %v894 = vrot.slane %v887, %v893
          %v895 = vcombine.low %v870, %v878
          %v897 = vunpack.c.l.s4 1934713408
          %v898 = vunpack.c.0.s8 %v897
          %v899 = vlaneseq
          %v900 = vshrl.u32 %v899, 7
          %v901 = vsub.s32 %v898, %v900
          %v902 = vrot.slane %v895, %v901
          %v903 = vcombine.low %v886, %v894
          %v905 = vunpack.c.l.s4 1934713408
          %v906 = vunpack.c.0.s8 %v905
          %v907 = vlaneseq
          %v908 = vshrl.u32 %v907, 7
          %v909 = vsub.s32 %v906, %v908
          %v910 = vrot.slane %v903, %v909
          %v911 = vcombine.low %v902, %v910
          %v912 = vcombine.high %v902, %v910
          %v913 = vpack.c.bf16 %v911, %v911
          %v914 = vpack.c.bf16 %v912, %v912
          %916 = vrot.lane.b32.xlu0 %v718, 112
          %v917 = vpop.permute.xlu0 %916
          %v919 = vcombine.high %v718, 0.0
          %v921 = vunpack.c.l.s4 1983009808
          %v922 = vunpack.c.0.s8 %v921
          %v923 = vlaneseq
          %v924 = vshrl.u32 %v923, 7
          %v925 = vsub.s32 %v922, %v924
          %v926 = vrot.slane %v718, %v925
          %v928 = vunpack.c.l.s4 1983009808
          %v929 = vunpack.c.0.s8 %v928
          %v930 = vlaneseq
          %v931 = vshrl.u32 %v930, 7
          %v932 = vsub.s32 %v929, %v931
          %v933 = vrot.slane %v919, %v932
          %v934 = vcombine.high %v917, 0.0
          %v936 = vunpack.c.l.s4 1983009808
          %v937 = vunpack.c.0.s8 %v936
          %v938 = vlaneseq
          %v939 = vshrl.u32 %v938, 7
          %v940 = vsub.s32 %v937, %v939
          %v941 = vrot.slane %v917, %v940
          %v943 = vunpack.c.l.s4 1983009808
          %v944 = vunpack.c.0.s8 %v943
          %v945 = vlaneseq
          %v946 = vshrl.u32 %v945, 7
          %v947 = vsub.s32 %v944, %v946
          %v948 = vrot.slane %v934, %v947
          %v949 = vcombine.low %v926, %v941
          %v950 = vcombine.high %v926, %v941
          %v952 = vunpack.c.l.s4 1934713408
          %v953 = vunpack.c.0.s8 %v952
          %v954 = vlaneseq
          %v955 = vshrl.u32 %v954, 7
          %v956 = vsub.s32 %v953, %v955
          %v957 = vrot.slane %v949, %v956
          %v959 = vunpack.c.l.s4 1934713408
          %v960 = vunpack.c.0.s8 %v959
          %v961 = vlaneseq
          %v962 = vshrl.u32 %v961, 7
          %v963 = vsub.s32 %v960, %v962
          %v964 = vrot.slane %v950, %v963
          %v965 = vcombine.low %v933, %v948
          %v966 = vcombine.high %v933, %v948
          %v968 = vunpack.c.l.s4 1934713408
          %v969 = vunpack.c.0.s8 %v968
          %v970 = vlaneseq
          %v971 = vshrl.u32 %v970, 7
          %v972 = vsub.s32 %v969, %v971
          %v973 = vrot.slane %v965, %v972
          %v975 = vunpack.c.l.s4 1934713408
          %v976 = vunpack.c.0.s8 %v975
          %v977 = vlaneseq
          %v978 = vshrl.u32 %v977, 7
          %v979 = vsub.s32 %v976, %v978
          %v980 = vrot.slane %v966, %v979
          %v981 = vcombine.high %v957, 0.0
          %v982 = vcombine.high %v964, 0.0
          %v983 = vcombine.high %v973, 0.0
          %v984 = vcombine.high %v980, 0.0
          %v985 = vcombine.low %v957, %v964
          %v987 = vunpack.c.l.s4 1983009808
          %v988 = vunpack.c.0.s8 %v987
          %v989 = vlaneseq
          %v990 = vshrl.u32 %v989, 7
          %v991 = vsub.s32 %v988, %v990
          %v992 = vrot.slane %v985, %v991
          %v993 = vcombine.low %v981, %v982
          %v995 = vunpack.c.l.s4 1983009808
          %v996 = vunpack.c.0.s8 %v995
          %v997 = vlaneseq
          %v998 = vshrl.u32 %v997, 7
          %v999 = vsub.s32 %v996, %v998
          %v1000 = vrot.slane %v993, %v999
          %v1001 = vcombine.low %v973, %v980
          %v1003 = vunpack.c.l.s4 1983009808
          %v1004 = vunpack.c.0.s8 %v1003
          %v1005 = vlaneseq
          %v1006 = vshrl.u32 %v1005, 7
          %v1007 = vsub.s32 %v1004, %v1006
          %v1008 = vrot.slane %v1001, %v1007
          %v1009 = vcombine.low %v983, %v984
          %v1011 = vunpack.c.l.s4 1983009808
          %v1012 = vunpack.c.0.s8 %v1011
          %v1013 = vlaneseq
          %v1014 = vshrl.u32 %v1013, 7
          %v1015 = vsub.s32 %v1012, %v1014
          %v1016 = vrot.slane %v1009, %v1015
          %v1017 = vcombine.low %v992, %v1000
          %v1019 = vunpack.c.l.s4 1934713408
          %v1020 = vunpack.c.0.s8 %v1019
          %v1021 = vlaneseq
          %v1022 = vshrl.u32 %v1021, 7
          %v1023 = vsub.s32 %v1020, %v1022
          %v1024 = vrot.slane %v1017, %v1023
          %v1025 = vcombine.low %v1008, %v1016
          %v1027 = vunpack.c.l.s4 1934713408
          %v1028 = vunpack.c.0.s8 %v1027
          %v1029 = vlaneseq
          %v1030 = vshrl.u32 %v1029, 7
          %v1031 = vsub.s32 %v1028, %v1030
          %v1032 = vrot.slane %v1025, %v1031
          %v1033 = vcombine.low %v1024, %v1032
          %v1034 = vcombine.high %v1024, %v1032
          %v1035 = vpack.c.bf16 %v1033, %v1033
          %v1036 = vpack.c.bf16 %v1034, %v1034
          %1038 = vrot.lane.b32.xlu0 %v787, 112
          %v1039 = vpop.permute.xlu0 %1038
          %v1041 = vcombine.high %v787, 0.0
          %v1043 = vunpack.c.l.s4 1983009808
          %v1044 = vunpack.c.0.s8 %v1043
          %v1045 = vlaneseq
          %v1046 = vshrl.u32 %v1045, 7
          %v1047 = vsub.s32 %v1044, %v1046
          %v1048 = vrot.slane %v787, %v1047
          %v1050 = vunpack.c.l.s4 1983009808
          %v1051 = vunpack.c.0.s8 %v1050
          %v1052 = vlaneseq
          %v1053 = vshrl.u32 %v1052, 7
          %v1054 = vsub.s32 %v1051, %v1053
          %v1055 = vrot.slane %v1041, %v1054
          %v1056 = vcombine.high %v1039, 0.0
          %v1058 = vunpack.c.l.s4 1983009808
          %v1059 = vunpack.c.0.s8 %v1058
          %v1060 = vlaneseq
          %v1061 = vshrl.u32 %v1060, 7
          %v1062 = vsub.s32 %v1059, %v1061
          %v1063 = vrot.slane %v1039, %v1062
          %v1065 = vunpack.c.l.s4 1983009808
          %v1066 = vunpack.c.0.s8 %v1065
          %v1067 = vlaneseq
          %v1068 = vshrl.u32 %v1067, 7
          %v1069 = vsub.s32 %v1066, %v1068
          %v1070 = vrot.slane %v1056, %v1069
          %v1071 = vcombine.low %v1048, %v1063
          %v1072 = vcombine.high %v1048, %v1063
          %v1074 = vunpack.c.l.s4 1934713408
          %v1075 = vunpack.c.0.s8 %v1074
          %v1076 = vlaneseq
          %v1077 = vshrl.u32 %v1076, 7
          %v1078 = vsub.s32 %v1075, %v1077
          %v1079 = vrot.slane %v1071, %v1078
          %v1081 = vunpack.c.l.s4 1934713408
          %v1082 = vunpack.c.0.s8 %v1081
          %v1083 = vlaneseq
          %v1084 = vshrl.u32 %v1083, 7
          %v1085 = vsub.s32 %v1082, %v1084
          %v1086 = vrot.slane %v1072, %v1085
          %v1087 = vcombine.low %v1055, %v1070
          %v1088 = vcombine.high %v1055, %v1070
          %v1090 = vunpack.c.l.s4 1934713408
          %v1091 = vunpack.c.0.s8 %v1090
          %v1092 = vlaneseq
          %v1093 = vshrl.u32 %v1092, 7
          %v1094 = vsub.s32 %v1091, %v1093
          %v1095 = vrot.slane %v1087, %v1094
          %v1097 = vunpack.c.l.s4 1934713408
          %v1098 = vunpack.c.0.s8 %v1097
          %v1099 = vlaneseq
          %v1100 = vshrl.u32 %v1099, 7
          %v1101 = vsub.s32 %v1098, %v1100
          %v1102 = vrot.slane %v1088, %v1101
          %v1103 = vcombine.high %v1079, 0.0
          %v1104 = vcombine.high %v1086, 0.0
          %v1105 = vcombine.high %v1095, 0.0
          %v1106 = vcombine.high %v1102, 0.0
          %v1107 = vcombine.low %v1079, %v1086
          %v1109 = vunpack.c.l.s4 1983009808
          %v1110 = vunpack.c.0.s8 %v1109
          %v1111 = vlaneseq
          %v1112 = vshrl.u32 %v1111, 7
          %v1113 = vsub.s32 %v1110, %v1112
          %v1114 = vrot.slane %v1107, %v1113
          %v1115 = vcombine.low %v1103, %v1104
          %v1117 = vunpack.c.l.s4 1983009808
          %v1118 = vunpack.c.0.s8 %v1117
          %v1119 = vlaneseq
          %v1120 = vshrl.u32 %v1119, 7
          %v1121 = vsub.s32 %v1118, %v1120
          %v1122 = vrot.slane %v1115, %v1121
          %v1123 = vcombine.low %v1095, %v1102
          %v1125 = vunpack.c.l.s4 1983009808
          %v1126 = vunpack.c.0.s8 %v1125
          %v1127 = vlaneseq
          %v1128 = vshrl.u32 %v1127, 7
          %v1129 = vsub.s32 %v1126, %v1128
          %v1130 = vrot.slane %v1123, %v1129
          %v1131 = vcombine.low %v1105, %v1106
          %v1133 = vunpack.c.l.s4 1983009808
          %v1134 = vunpack.c.0.s8 %v1133
          %v1135 = vlaneseq
          %v1136 = vshrl.u32 %v1135, 7
          %v1137 = vsub.s32 %v1134, %v1136
          %v1138 = vrot.slane %v1131, %v1137
          %v1139 = vcombine.low %v1114, %v1122
          %v1141 = vunpack.c.l.s4 1934713408
          %v1142 = vunpack.c.0.s8 %v1141
          %v1143 = vlaneseq
          %v1144 = vshrl.u32 %v1143, 7
          %v1145 = vsub.s32 %v1142, %v1144
          %v1146 = vrot.slane %v1139, %v1145
          %v1147 = vcombine.low %v1130, %v1138
          %v1149 = vunpack.c.l.s4 1934713408
          %v1150 = vunpack.c.0.s8 %v1149
          %v1151 = vlaneseq
          %v1152 = vshrl.u32 %v1151, 7
          %v1153 = vsub.s32 %v1150, %v1152
          %v1154 = vrot.slane %v1147, %v1153
          %v1155 = vcombine.low %v1146, %v1154
          %v1156 = vcombine.high %v1146, %v1154
          %v1157 = vpack.c.bf16 %v1155, %v1155
          %v1158 = vpack.c.bf16 %v1156, %v1156
          %vm1159 = vcmask 130048
          %v1161 = vsel %vm1159, %v913, 0
          %v1164 = vsel %vm1159, %v1035, 0
          %1166 = vmatprep.subr.bf16.mxu0 0
          %1167 = vmatpush1.bf16.xpose.msra.mxu0 %v1164
          %1168 = vmatprep.subr.bf16.mxu0 0
          %1169 = vmatpush1.bf16.xpose.msra.mxu0 0
          %1170 = vmatprep.subr.bf16.mxu0 0
          %1171 = vmatpush1.bf16.xpose.msra.mxu0 0
          %1172 = vmatprep.subr.bf16.mxu0 0
          %1173 = vmatpush1.bf16.xpose.msra.mxu0 0
          %1174 = vmatprep.subr.bf16.mxu0 0
          %1175 = vmatpush1.bf16.xpose.msra.mxu0 0
          %1176 = vmatprep.subr.bf16.mxu0 0
          %1177 = vmatpush1.bf16.xpose.msra.mxu0 0
          %1178 = vmatprep.subr.bf16.mxu0 0
          %1179 = vmatpush1.bf16.xpose.msra.mxu0 0
          %1180 = vmatprep.subr.bf16.mxu0 0
          %1181 = vmatpush1.bf16.xpose.msra.mxu0 0
          %1182 = vmatprep.subr.bf16.mxu0 0
          %1183 = vmatpush1.bf16.xpose.msra.mxu0 0
          %1184 = vmatprep.subr.bf16.mxu0 0
          %1185 = vmatpush1.bf16.xpose.msra.mxu0 0
          %1186 = vmatprep.subr.bf16.mxu0 0
          %1187 = vmatpush1.bf16.xpose.msra.mxu0 0
          %1188 = vmatprep.subr.bf16.mxu0 0
          %1189 = vmatpush1.bf16.xpose.msra.mxu0 0
          %1190 = vmatprep.subr.bf16.mxu0 0
          %1191 = vmatpush1.bf16.xpose.msra.mxu0 0
          %1192 = vmatprep.subr.bf16.mxu0 0
          %1193 = vmatpush1.bf16.xpose.msra.mxu0 0
          %1194 = vmatprep.subr.bf16.mxu0 0
          %1195 = vmatpush1.bf16.xpose.msra.mxu0 0
          %1196 = vmatprep.subr.bf16.mxu0 0
          %1197 = vmatpush1.bf16.xpose.msra.mxu0 0
          %1198 = vmatprep.mubr.bf16.mxu0 0
          %1199 = vmatmul.mubr.bf16.gmra.mrb[0].mxu0 %v1161
          %v1200 = vpop.f32.mrb[0].mxu0
          %v1201 = vadd.f32 %v640, %v1200
          %v1202 = vpop.f32.mrb[0].mxu0
          %v1203 = vpop.f32.mrb[0].mxu0
          %v1204 = vpop.f32.mrb[0].mxu0
          %1205 = vdwg.mxu0
          %v1207 = vsel %vm1159, %v914, 0
          %v1210 = vsel %vm1159, %v1036, 0
          %1212 = vmatprep.subr.bf16.mxu0 0
          %1213 = vmatpush1.bf16.xpose.msra.mxu0 %v1210
          %1214 = vmatprep.subr.bf16.mxu0 0
          %1215 = vmatpush1.bf16.xpose.msra.mxu0 0
          %1216 = vmatprep.subr.bf16.mxu0 0
          %1217 = vmatpush1.bf16.xpose.msra.mxu0 0
          %1218 = vmatprep.subr.bf16.mxu0 0
          %1219 = vmatpush1.bf16.xpose.msra.mxu0 0
          %1220 = vmatprep.subr.bf16.mxu0 0
          %1221 = vmatpush1.bf16.xpose.msra.mxu0 0
          %1222 = vmatprep.subr.bf16.mxu0 0
          %1223 = vmatpush1.bf16.xpose.msra.mxu0 0
          %1224 = vmatprep.subr.bf16.mxu0 0
          %1225 = vmatpush1.bf16.xpose.msra.mxu0 0
          %1226 = vmatprep.subr.bf16.mxu0 0
          %1227 = vmatpush1.bf16.xpose.msra.mxu0 0
          %1228 = vmatprep.subr.bf16.mxu0 0
          %1229 = vmatpush1.bf16.xpose.msra.mxu0 0
          %1230 = vmatprep.subr.bf16.mxu0 0
          %1231 = vmatpush1.bf16.xpose.msra.mxu0 0
          %1232 = vmatprep.subr.bf16.mxu0 0
          %1233 = vmatpush1.bf16.xpose.msra.mxu0 0
          %1234 = vmatprep.subr.bf16.mxu0 0
          %1235 = vmatpush1.bf16.xpose.msra.mxu0 0
          %1236 = vmatprep.subr.bf16.mxu0 0
          %1237 = vmatpush1.bf16.xpose.msra.mxu0 0
          %1238 = vmatprep.subr.bf16.mxu0 0
          %1239 = vmatpush1.bf16.xpose.msra.mxu0 0
          %1240 = vmatprep.subr.bf16.mxu0 0
          %1241 = vmatpush1.bf16.xpose.msra.mxu0 0
          %1242 = vmatprep.subr.bf16.mxu0 0
          %1243 = vmatpush1.bf16.xpose.msra.mxu0 0
          %1244 = vmatprep.mubr.bf16.mxu0 0
          %1245 = vmatmul.mubr.bf16.gmra.mrb[0].mxu0 %v1207
          %v1246 = vpop.f32.mrb[0].mxu0
          %v1247 = vadd.f32 %v640, %v1246
          %v1248 = vpop.f32.mrb[0].mxu0
          %v1249 = vpop.f32.mrb[0].mxu0
          %v1250 = vpop.f32.mrb[0].mxu0
          %1251 = vdwg.mxu0
          %vm1252 = vcmask 64512
          %v1253 = vsel %vm1252, %v1201, -inf
          %1254 = vmax.xlane.f32.xlu0 %v1253
          %v1255 = vpop.xlane.xlu0 %1254
          %v1256 = vsel %vm1252, %v1247, -inf
          %1257 = vmax.xlane.f32.xlu0 %v1256
          %v1258 = vpop.xlane.xlu0 %1257
          %v1259 = vsub.f32 %v1201, %v1255
          %v1260 = vsub.f32 %v1247, %v1258
          %v1261 = vmul.f32 %v1259, 1.442695
          %v1262 = vpow.pop %v1261
          %v1263 = vmul.f32 %v1260, 1.442695
          %v1264 = vpow.pop %v1263
          %v1265 = vsel %vm1252, %v1262, 0.0
          %1266 = vadd.xlane.f32.xlu0 %v1265
          %v1267 = vpop.xlane.xlu0 %1266
          %v1268 = vsel %vm1252, %v1264, 0.0
          %1269 = vadd.xlane.f32.xlu0 %v1268
          %v1270 = vpop.xlane.xlu0 %1269
          %v1271 = vrcp.pop %v1267
          %v1272 = vrcp.pop %v1270
          %v1273 = vmul.f32 %v1262, %v1271
          %v1274 = vmul.f32 %v1264, %v1272
          %v1275 = vpack.c.bf16 %v1273, %v1273
          %v1276 = vpack.c.bf16 %v1274, %v1274
          %v1278 = vsel %vm1252, %v1275, 0
          %vm1280 = vcmask 1043456
          %v1282 = vsel %vm1280, %v1157, 0
          %1284 = vmatprep.subr.bf16.mxu0 0
          %1285 = vmatpush1.bf16.msra.mxu0 %v1282
          %1286 = vmatprep.subr.bf16.mxu0 0
          %1287 = vmatpush1.bf16.msra.mxu0 0
          %1288 = vmatprep.subr.bf16.mxu0 0
          %1289 = vmatpush1.bf16.msra.mxu0 0
          %1290 = vmatprep.subr.bf16.mxu0 0
          %1291 = vmatpush1.bf16.msra.mxu0 0
          %1292 = vmatprep.subr.bf16.mxu0 0
          %1293 = vmatpush1.bf16.msra.mxu0 0
          %1294 = vmatprep.subr.bf16.mxu0 0
          %1295 = vmatpush1.bf16.msra.mxu0 0
          %1296 = vmatprep.subr.bf16.mxu0 0
          %1297 = vmatpush1.bf16.msra.mxu0 0
          %1298 = vmatprep.subr.bf16.mxu0 0
          %1299 = vmatpush1.bf16.msra.mxu0 0
          %1300 = vmatprep.subr.bf16.mxu0 0
          %1301 = vmatpush1.bf16.msra.mxu0 0
          %1302 = vmatprep.subr.bf16.mxu0 0
          %1303 = vmatpush1.bf16.msra.mxu0 0
          %1304 = vmatprep.subr.bf16.mxu0 0
          %1305 = vmatpush1.bf16.msra.mxu0 0
          %1306 = vmatprep.subr.bf16.mxu0 0
          %1307 = vmatpush1.bf16.msra.mxu0 0
          %1308 = vmatprep.subr.bf16.mxu0 0
          %1309 = vmatpush1.bf16.msra.mxu0 0
          %1310 = vmatprep.subr.bf16.mxu0 0
          %1311 = vmatpush1.bf16.msra.mxu0 0
          %1312 = vmatprep.subr.bf16.mxu0 0
          %1313 = vmatpush1.bf16.msra.mxu0 0
          %1314 = vmatprep.subr.bf16.mxu0 0
          %1315 = vmatpush1.bf16.msra.mxu0 0
          %1316 = vmatprep.mubr.bf16.mxu0 0
          %1317 = vmatmul.mubr.bf16.gmra.mrb[0].mxu0 %v1278
          %v1318 = vpop.f32.mrb[0].mxu0
          %v1319 = vadd.f32 0.0, %v1318
          %v1320 = vpop.f32.mrb[0].mxu0
          %v1321 = vpop.f32.mrb[0].mxu0
          %v1322 = vpop.f32.mrb[0].mxu0
          %1323 = vdwg.mxu0
          %v1325 = vsel %vm1252, %v1276, 0
          %v1328 = vsel %vm1280, %v1158, 0
          %1330 = vmatprep.subr.bf16.mxu0 0
          %1331 = vmatpush1.bf16.msra.mxu0 %v1328
          %1332 = vmatprep.subr.bf16.mxu0 0
          %1333 = vmatpush1.bf16.msra.mxu0 0
          %1334 = vmatprep.subr.bf16.mxu0 0
          %1335 = vmatpush1.bf16.msra.mxu0 0
          %1336 = vmatprep.subr.bf16.mxu0 0
          %1337 = vmatpush1.bf16.msra.mxu0 0
          %1338 = vmatprep.subr.bf16.mxu0 0
          %1339 = vmatpush1.bf16.msra.mxu0 0
          %1340 = vmatprep.subr.bf16.mxu0 0
          %1341 = vmatpush1.bf16.msra.mxu0 0
          %1342 = vmatprep.subr.bf16.mxu0 0
          %1343 = vmatpush1.bf16.msra.mxu0 0
          %1344 = vmatprep.subr.bf16.mxu0 0
          %1345 = vmatpush1.bf16.msra.mxu0 0
          %1346 = vmatprep.subr.bf16.mxu0 0
          %1347 = vmatpush1.bf16.msra.mxu0 0
          %1348 = vmatprep.subr.bf16.mxu0 0
          %1349 = vmatpush1.bf16.msra.mxu0 0
          %1350 = vmatprep.subr.bf16.mxu0 0
          %1351 = vmatpush1.bf16.msra.mxu0 0
          %1352 = vmatprep.subr.bf16.mxu0 0
          %1353 = vmatpush1.bf16.msra.mxu0 0
          %1354 = vmatprep.subr.bf16.mxu0 0
          %1355 = vmatpush1.bf16.msra.mxu0 0
          %1356 = vmatprep.subr.bf16.mxu0 0
          %1357 = vmatpush1.bf16.msra.mxu0 0
          %1358 = vmatprep.subr.bf16.mxu0 0
          %1359 = vmatpush1.bf16.msra.mxu0 0
          %1360 = vmatprep.subr.bf16.mxu0 0
          %1361 = vmatpush1.bf16.msra.mxu0 0
          %1362 = vmatprep.mubr.bf16.mxu0 0
          %1363 = vmatmul.mubr.bf16.gmra.mrb[0].mxu0 %v1325
          %v1364 = vpop.f32.mrb[0].mxu0
          %v1365 = vadd.f32 0.0, %v1364
          %v1366 = vpop.f32.mrb[0].mxu0
          %v1367 = vpop.f32.mrb[0].mxu0
          %v1368 = vpop.f32.mrb[0].mxu0
          %1369 = vdwg.mxu0
          %v1370 = vcombine.high %v1319, 0.0
          %v1372 = vunpack.c.l.s4 1983009808
          %v1373 = vunpack.c.0.s8 %v1372
          %v1374 = vlaneseq
          %v1375 = vshrl.u32 %v1374, 7
          %v1376 = vsub.s32 %v1373, %v1375
          %v1377 = vrot.slane %v1319, %v1376
          %v1379 = vunpack.c.l.s4 1983009808
          %v1380 = vunpack.c.0.s8 %v1379
          %v1381 = vlaneseq
          %v1382 = vshrl.u32 %v1381, 7
          %v1383 = vsub.s32 %v1380, %v1382
          %v1384 = vrot.slane %v1370, %v1383
          %v1385 = vcombine.high %v1365, 0.0
          %v1387 = vunpack.c.l.s4 1983009808
          %v1388 = vunpack.c.0.s8 %v1387
          %v1389 = vlaneseq
          %v1390 = vshrl.u32 %v1389, 7
          %v1391 = vsub.s32 %v1388, %v1390
          %v1392 = vrot.slane %v1365, %v1391
          %v1394 = vunpack.c.l.s4 1983009808
          %v1395 = vunpack.c.0.s8 %v1394
          %v1396 = vlaneseq
          %v1397 = vshrl.u32 %v1396, 7
          %v1398 = vsub.s32 %v1395, %v1397
          %v1399 = vrot.slane %v1385, %v1398
          %v1400 = vcombine.low %v1377, %v1392
          %v1401 = vcombine.high %v1377, %v1392
          %v1403 = vunpack.c.l.s4 1934713408
          %v1404 = vunpack.c.0.s8 %v1403
          %v1405 = vlaneseq
          %v1406 = vshrl.u32 %v1405, 7
          %v1407 = vsub.s32 %v1404, %v1406
          %v1408 = vrot.slane %v1400, %v1407
          %v1410 = vunpack.c.l.s4 1934713408
          %v1411 = vunpack.c.0.s8 %v1410
          %v1412 = vlaneseq
          %v1413 = vshrl.u32 %v1412, 7
          %v1414 = vsub.s32 %v1411, %v1413
          %v1415 = vrot.slane %v1401, %v1414
          %v1416 = vcombine.low %v1384, %v1399
          %v1417 = vcombine.high %v1384, %v1399
          %v1419 = vunpack.c.l.s4 1934713408
          %v1420 = vunpack.c.0.s8 %v1419
          %v1421 = vlaneseq
          %v1422 = vshrl.u32 %v1421, 7
          %v1423 = vsub.s32 %v1420, %v1422
          %v1424 = vrot.slane %v1416, %v1423
          %v1426 = vunpack.c.l.s4 1934713408
          %v1427 = vunpack.c.0.s8 %v1426
          %v1428 = vlaneseq
          %v1429 = vshrl.u32 %v1428, 7
          %v1430 = vsub.s32 %v1427, %v1429
          %v1431 = vrot.slane %v1417, %v1430
          %v1432 = vcombine.high %v1408, 0.0
          %v1433 = vcombine.high %v1415, 0.0
          %v1434 = vcombine.high %v1424, 0.0
          %v1435 = vcombine.high %v1431, 0.0
          %v1436 = vcombine.low %v1408, %v1415
          %v1438 = vunpack.c.l.s4 1983009808
          %v1439 = vunpack.c.0.s8 %v1438
          %v1440 = vlaneseq
          %v1441 = vshrl.u32 %v1440, 7
          %v1442 = vsub.s32 %v1439, %v1441
          %v1443 = vrot.slane %v1436, %v1442
          %v1444 = vcombine.low %v1432, %v1433
          %v1446 = vunpack.c.l.s4 1983009808
          %v1447 = vunpack.c.0.s8 %v1446
          %v1448 = vlaneseq
          %v1449 = vshrl.u32 %v1448, 7
          %v1450 = vsub.s32 %v1447, %v1449
          %v1451 = vrot.slane %v1444, %v1450
          %v1452 = vcombine.low %v1424, %v1431
          %v1454 = vunpack.c.l.s4 1983009808
          %v1455 = vunpack.c.0.s8 %v1454
          %v1456 = vlaneseq
          %v1457 = vshrl.u32 %v1456, 7
          %v1458 = vsub.s32 %v1455, %v1457
          %v1459 = vrot.slane %v1452, %v1458
          %v1460 = vcombine.low %v1434, %v1435
          %v1462 = vunpack.c.l.s4 1983009808
          %v1463 = vunpack.c.0.s8 %v1462
          %v1464 = vlaneseq
          %v1465 = vshrl.u32 %v1464, 7
          %v1466 = vsub.s32 %v1463, %v1465
          %v1467 = vrot.slane %v1460, %v1466
          %v1468 = vcombine.low %v1443, %v1451
          %v1470 = vunpack.c.l.s4 1934713408
          %v1471 = vunpack.c.0.s8 %v1470
          %v1472 = vlaneseq
          %v1473 = vshrl.u32 %v1472, 7
          %v1474 = vsub.s32 %v1471, %v1473
          %v1475 = vrot.slane %v1468, %v1474
          %v1476 = vcombine.low %v1459, %v1467
          %v1478 = vunpack.c.l.s4 1934713408
          %v1479 = vunpack.c.0.s8 %v1478
          %v1480 = vlaneseq
          %v1481 = vshrl.u32 %v1480, 7
          %v1482 = vsub.s32 %v1479, %v1481
          %v1483 = vrot.slane %v1476, %v1482
          %v1484 = vcombine.low %v1475, %v1483
          %v1485 = vcombine.high %v1475, %v1483
          %1487 = vrot.lane.b32.xlu0 %v1485, 16
          %v1488 = vpop.permute.xlu0 %1487
          %v1490 = vsel %vm1159, %v1484, %v1488
          %v1491 = vmul.f32 %v1490, %v643
          %v1492 = vpack.c.bf16 %v1491, %v1491
          %s1493 = smul.addr %s652, 4
          %s1494 = scalar_lea.vmem %s7, %s1493
          %v1495 = vld [vmem:[%s1494] sm:$0xf]
          %v1496 = vld [vmem:[%s1494 + $0x4] sm:$0xf]
          %v1497 = vld [vmem:[%s1494 + $0x8] sm:$0xf]
          %v1498 = vld [vmem:[%s1494 + $0xc] sm:$0xf]
          %s1499 = scalar_lea.vmem %s8, %s645
          %v1500 = vld [vmem:[%s1499] sm:$0x1]
          %v1502 = vlaneseq
          %v1503 = vshrl.u32 %v1502, 7
          %v1504 = vsub.s32 0, %v1503
          %v1505 = vrot.slane %v1500, %v1504
          %v1511 = vunpack.c.l.b16 %v1495
          %v1512 = vunpack.c.l.b16 %v1496
          %v1513 = vunpack.c.l.b16 %v1497
          %v1514 = vunpack.c.l.b16 %v1498
          %v1515 = vpack.c.b16 %v1512, %v1511
          %v1516 = vpack.c.b16 %v1514, %v1513
          %v1520 = vsel %vm679, %v1492, 0
          %1522 = vmatprep.subr.bf16.mxu0 0
          %1523 = vmatpush1.bf16.msra.mxu0 %v1515
          %1524 = vmatprep.subr.bf16.mxu0 0
          %1525 = vmatpush1.bf16.msra.mxu0 %v1516
          %1526 = vmatprep.subr.bf16.mxu0 0
          %1527 = vmatpush1.bf16.msra.mxu0 0
          %1528 = vmatprep.subr.bf16.mxu0 0
          %1529 = vmatpush1.bf16.msra.mxu0 0
          %1530 = vmatprep.subr.bf16.mxu0 0
          %1531 = vmatpush1.bf16.msra.mxu0 0
          %1532 = vmatprep.subr.bf16.mxu0 0
          %1533 = vmatpush1.bf16.msra.mxu0 0
          %1534 = vmatprep.subr.bf16.mxu0 0
          %1535 = vmatpush1.bf16.msra.mxu0 0
          %1536 = vmatprep.subr.bf16.mxu0 0
          %1537 = vmatpush1.bf16.msra.mxu0 0
          %1538 = vmatprep.subr.bf16.mxu0 0
          %1539 = vmatpush1.bf16.msra.mxu0 0
          %1540 = vmatprep.subr.bf16.mxu0 0
          %1541 = vmatpush1.bf16.msra.mxu0 0
          %1542 = vmatprep.subr.bf16.mxu0 0
          %1543 = vmatpush1.bf16.msra.mxu0 0
          %1544 = vmatprep.subr.bf16.mxu0 0
          %1545 = vmatpush1.bf16.msra.mxu0 0
          %1546 = vmatprep.subr.bf16.mxu0 0
          %1547 = vmatpush1.bf16.msra.mxu0 0
          %1548 = vmatprep.subr.bf16.mxu0 0
          %1549 = vmatpush1.bf16.msra.mxu0 0
          %1550 = vmatprep.subr.bf16.mxu0 0
          %1551 = vmatpush1.bf16.msra.mxu0 0
          %1552 = vmatprep.subr.bf16.mxu0 0
          %1553 = vmatpush1.bf16.msra.mxu0 0
          %1554 = vmatprep.mubr.bf16.mxu0 0
          %1555 = vmatmul.mubr.bf16.gmra.mrb[0].mxu0 %v1520
          %v1556 = vpop.f32.mrb[0].mxu0
          %v1557 = vadd.f32 %v1505, %v1556
          %v1558 = vpop.f32.mrb[0].mxu0
          %v1559 = vpop.f32.mrb[0].mxu0
          %v1560 = vpop.f32.mrb[0].mxu0
          %1561 = vdwg.mxu0
          %v1562 = vadd.f32 %v650, %v1557
          %s1563 = scalar_lea.vmem %s9, %s645
          %v1564 = vld [vmem:[%s1563] sm:$0x1]
          %s1565 = scalar_lea.vmem %s10, %s645
          %v1566 = vld [vmem:[%s1565] sm:$0x1]
          %v1567 = vsel %vm679, %v1562, 0.0
          %1568 = vadd.xlane.f32.xlu0 %v1567
          %v1569 = vpop.xlane.xlu0 %1568
          %v1570 = vrcp.pop 32.0
          %v1571 = vmul.f32 %v1569, %v1570
          %v1572 = vsub.f32 %v1562, %v1571
          %v1573 = vmul.f32 %v1572, %v1572
          %v1574 = vsel %vm679, %v1573, 0.0
          %1575 = vadd.xlane.f32.xlu0 %v1574
          %v1576 = vpop.xlane.xlu0 %1575
          %v1577 = vmul.f32 %v1576, %v1570
          %v1578 = vadd.f32 %v1577, 1e-05
          %v1579 = vrsqrt.pop %v1578
          %v1580 = vmul.f32 %v1572, %v1579
          %v1582 = vlaneseq
          %v1583 = vshrl.u32 %v1582, 7
          %v1584 = vsub.s32 0, %v1583
          %v1585 = vrot.slane %v1564, %v1584
          %v1587 = vmul.f32 %v1580, %v1585
          %v1589 = vlaneseq
          %v1590 = vshrl.u32 %v1589, 7
          %v1591 = vsub.s32 0, %v1590
          %v1592 = vrot.slane %v1566, %v1591
          %v1594 = vadd.f32 %v1587, %v1592
          %v1595 = vpack.c.bf16 %v1594, %v1594
          %s1596 = smul.addr %s652, 4
          %s1597 = scalar_lea.vmem [#allocation8], %s1596
          %v1598 = vld [vmem:[%s1597] sm:$0xf]
          %v1599 = vld [vmem:[%s1597 + $0x4] sm:$0xf]
          %v1600 = vld [vmem:[%s1597 + $0x8] sm:$0xf]
          %v1601 = vld [vmem:[%s1597 + $0xc] sm:$0xf]
          %s1602 = scalar_lea.vmem %s12, %s645
          %v1603 = vld [vmem:[%s1602] sm:$0x1]
          %v1605 = vlaneseq
          %v1606 = vshrl.u32 %v1605, 7
          %v1607 = vsub.s32 0, %v1606
          %v1608 = vrot.slane %v1603, %v1607
          %v1614 = vunpack.c.l.b16 %v1598
          %v1615 = vunpack.c.l.b16 %v1599
          %v1616 = vunpack.c.l.b16 %v1600
          %v1617 = vunpack.c.l.b16 %v1601
          %v1618 = vpack.c.b16 %v1615, %v1614
          %v1619 = vpack.c.b16 %v1617, %v1616
          %v1623 = vsel %vm679, %v1595, 0
          %1625 = vmatprep.subr.bf16.mxu0 0
          %1626 = vmatpush1.bf16.msra.mxu0 %v1618
          %1627 = vmatprep.subr.bf16.mxu0 0
          %1628 = vmatpush1.bf16.msra.mxu0 %v1619
          %1629 = vmatprep.subr.bf16.mxu0 0
          %1630 = vmatpush1.bf16.msra.mxu0 0
          %1631 = vmatprep.subr.bf16.mxu0 0
          %1632 = vmatpush1.bf16.msra.mxu0 0
          %1633 = vmatprep.subr.bf16.mxu0 0
          %1634 = vmatpush1.bf16.msra.mxu0 0
          %1635 = vmatprep.subr.bf16.mxu0 0
          %1636 = vmatpush1.bf16.msra.mxu0 0
          %1637 = vmatprep.subr.bf16.mxu0 0
          %1638 = vmatpush1.bf16.msra.mxu0 0
          %1639 = vmatprep.subr.bf16.mxu0 0
          %1640 = vmatpush1.bf16.msra.mxu0 0
          %1641 = vmatprep.subr.bf16.mxu0 0
          %1642 = vmatpush1.bf16.msra.mxu0 0
          %1643 = vmatprep.subr.bf16.mxu0 0
          %1644 = vmatpush1.bf16.msra.mxu0 0
          %1645 = vmatprep.subr.bf16.mxu0 0
          %1646 = vmatpush1.bf16.msra.mxu0 0
          %1647 = vmatprep.subr.bf16.mxu0 0
          %1648 = vmatpush1.bf16.msra.mxu0 0
          %1649 = vmatprep.subr.bf16.mxu0 0
          %1650 = vmatpush1.bf16.msra.mxu0 0
          %1651 = vmatprep.subr.bf16.mxu0 0
          %1652 = vmatpush1.bf16.msra.mxu0 0
          %1653 = vmatprep.subr.bf16.mxu0 0
          %1654 = vmatpush1.bf16.msra.mxu0 0
          %1655 = vmatprep.subr.bf16.mxu0 0
          %1656 = vmatpush1.bf16.msra.mxu0 0
          %1657 = vmatprep.mubr.bf16.mxu0 0
          %1658 = vmatmul.mubr.bf16.gmra.mrb[0].mxu0 %v1623
          %v1659 = vpop.f32.mrb[0].mxu0
          %v1660 = vadd.f32 %v1608, %v1659
          %v1661 = vpop.f32.mrb[0].mxu0
          %v1662 = vpop.f32.mrb[0].mxu0
          %v1663 = vpop.f32.mrb[0].mxu0
          %1664 = vdwg.mxu0
          %v1665 = vmax.f32 %v1660, 0.0
          %v1666 = vpack.c.bf16 %v1665, %v1665
          %s1667 = smul.u32 %s645, 8
          %s1668 = smul.addr %s1667, 4
          %s1669 = scalar_lea.vmem %s13, %s1668
          %v1670 = vld [vmem:[%s1669] sm:$0xf]
          %v1671 = vld [vmem:[%s1669 + $0x4] sm:$0xf]
          %v1672 = vld [vmem:[%s1669 + $0x8] sm:$0xf]
          %v1673 = vld [vmem:[%s1669 + $0xc] sm:$0xf]
          %v1674 = vld [vmem:[%s1669 + $0x10] sm:$0xf]
          %v1675 = vld [vmem:[%s1669 + $0x14] sm:$0xf]
          %v1676 = vld [vmem:[%s1669 + $0x18] sm:$0xf]
          %v1677 = vld [vmem:[%s1669 + $0x1c] sm:$0xf]
          %s1678 = scalar_lea.vmem %s14, %s645
          %v1679 = vld [vmem:[%s1678] sm:$0x1]
          %v1681 = vlaneseq
          %v1682 = vshrl.u32 %v1681, 7
          %v1683 = vsub.s32 0, %v1682
          %v1684 = vrot.slane %v1679, %v1683
          %v1694 = vunpack.c.l.b16 %v1670
          %v1695 = vunpack.c.l.b16 %v1671
          %v1696 = vunpack.c.l.b16 %v1672
          %v1697 = vunpack.c.l.b16 %v1673
          %v1698 = vunpack.c.l.b16 %v1674
          %v1699 = vunpack.c.l.b16 %v1675
          %v1700 = vunpack.c.l.b16 %v1676
          %v1701 = vunpack.c.l.b16 %v1677
          %v1702 = vpack.c.b16 %v1695, %v1694
          %v1703 = vpack.c.b16 %v1697, %v1696
          %v1704 = vpack.c.b16 %v1699, %v1698
          %v1705 = vpack.c.b16 %v1701, %v1700
          %vm1710 = vcmask 523264
          %v1712 = vsel %vm1710, %v1666, 0
          %1714 = vmatprep.subr.bf16.mxu0 0
          %1715 = vmatpush1.bf16.msra.mxu0 %v1702
          %1716 = vmatprep.subr.bf16.mxu0 0
          %1717 = vmatpush1.bf16.msra.mxu0 %v1703
          %1718 = vmatprep.subr.bf16.mxu0 0
          %1719 = vmatpush1.bf16.msra.mxu0 %v1704
          %1720 = vmatprep.subr.bf16.mxu0 0
          %1721 = vmatpush1.bf16.msra.mxu0 %v1705
          %1722 = vmatprep.subr.bf16.mxu0 0
          %1723 = vmatpush1.bf16.msra.mxu0 0
          %1724 = vmatprep.subr.bf16.mxu0 0
          %1725 = vmatpush1.bf16.msra.mxu0 0
          %1726 = vmatprep.subr.bf16.mxu0 0
          %1727 = vmatpush1.bf16.msra.mxu0 0
          %1728 = vmatprep.subr.bf16.mxu0 0
          %1729 = vmatpush1.bf16.msra.mxu0 0
          %1730 = vmatprep.subr.bf16.mxu0 0
          %1731 = vmatpush1.bf16.msra.mxu0 0
          %1732 = vmatprep.subr.bf16.mxu0 0
          %1733 = vmatpush1.bf16.msra.mxu0 0
          %1734 = vmatprep.subr.bf16.mxu0 0
          %1735 = vmatpush1.bf16.msra.mxu0 0
          %1736 = vmatprep.subr.bf16.mxu0 0
          %1737 = vmatpush1.bf16.msra.mxu0 0
          %1738 = vmatprep.subr.bf16.mxu0 0
          %1739 = vmatpush1.bf16.msra.mxu0 0
          %1740 = vmatprep.subr.bf16.mxu0 0
          %1741 = vmatpush1.bf16.msra.mxu0 0
          %1742 = vmatprep.subr.bf16.mxu0 0
          %1743 = vmatpush1.bf16.msra.mxu0 0
          %1744 = vmatprep.subr.bf16.mxu0 0
          %1745 = vmatpush1.bf16.msra.mxu0 0
          %1746 = vmatprep.mubr.bf16.mxu0 0
          %1747 = vmatmul.mubr.bf16.gmra.mrb[0].mxu0 %v1712
          %v1748 = vpop.f32.mrb[0].mxu0
          %v1749 = vadd.f32 %v1684, %v1748
          %v1750 = vpop.f32.mrb[0].mxu0
          %v1751 = vpop.f32.mrb[0].mxu0
          %v1752 = vpop.f32.mrb[0].mxu0
          %1753 = vdwg.mxu0
          %v1754 = vadd.f32 %v1594, %v1749
          %s1755 = scalar_lea.vmem %s15, %s645
          %v1756 = vld [vmem:[%s1755] sm:$0x1]
          %s1757 = scalar_lea.vmem %s16, %s645
          %v1758 = vld [vmem:[%s1757] sm:$0x1]
          %v1759 = vsel %vm679, %v1754, 0.0
          %1760 = vadd.xlane.f32.xlu0 %v1759
          %v1761 = vpop.xlane.xlu0 %1760
          %v1762 = vmul.f32 %v1761, %v1570
          %v1763 = vsub.f32 %v1754, %v1762
          %v1764 = vmul.f32 %v1763, %v1763
          %v1765 = vsel %vm679, %v1764, 0.0
          %1766 = vadd.xlane.f32.xlu0 %v1765
          %v1767 = vpop.xlane.xlu0 %1766
          %v1768 = vmul.f32 %v1767, %v1570
          %v1769 = vadd.f32 %v1768, 1e-05
          %v1770 = vrsqrt.pop %v1769
          %v1771 = vmul.f32 %v1763, %v1770
          %v1773 = vlaneseq
          %v1774 = vshrl.u32 %v1773, 7
          %v1775 = vsub.s32 0, %v1774
          %v1776 = vrot.slane %v1756, %v1775
          %v1778 = vmul.f32 %v1771, %v1776
          %v1780 = vlaneseq
          %v1781 = vshrl.u32 %v1780, 7
          %v1782 = vsub.s32 0, %v1781
          %v1783 = vrot.slane %v1758, %v1782
          %v1785 = vadd.f32 %v1778, %v1783
        $region109: #{tpu_custom_call.1} parent=87 // loop_footer
          %s649 = sadd.s32 1, %s645
        $region110: #{tpu_custom_call.1} parent=87 // loop_footer_branch
          %644 = sbr.rel target = $region106
        $region111: #{tpu_custom_call.1} parent=87 // loop_exit
          _
        %vm1786 = vcmask 261120
        %1787 = vst.msk [vmem:[%s627] sm:$0xff] %vm1786, %v650
        %s1788 = sand.u32 %s413, 1
        %s1789 = scalar_lea.sflag [#allocation4], %s1788
        %s1790 = sand.u32 %s413, 1
        %s1791 = smul.addr %s1790, 8
        %s1792 = scalar_lea.vmem [#allocation10], %s1791
        // Predicated region
        $region112: #{tpu_custom_call.1} parent=87 // pred_check
          %p1793 = pneg %p423
        $region113: #{tpu_custom_call.1} parent=87 // pred_check_branch
          %1795 = sbr.rel (%p1793) target = $region115
        $region114: #{tpu_custom_call.1} parent=87 // pred_region
          %s1797 = ssub.s32 128, 128
          %1798 = vsyncadd %s1789, %s1797
          %s1799 = smul.addr %s38, 128
          %s1800 = scalar_lea.hbm %s17, %s1799
          %s1802 = sshll.u32 %s1792, 4
          %s1803 = int_to_ptr.vmem [resolvable:$true] %s1802
          %1805 = dma.vmem_to_hbm [thread:$0]  %s1803, 128, %s1800, %s1789
        $region115: #{tpu_custom_call.1} parent=87 // pred_fallthru
          _
      $region88: #{tpu_custom_call.1} parent=5 // pred_fallthru
        _
      %p1806 = scmp.le.s32.totalorder 2, %s33
      // Predicated region
      $region116: #{tpu_custom_call.1} parent=5 // pred_check
        %p1807 = pneg %p1806
      $region117: #{tpu_custom_call.1} parent=5 // pred_check_branch
        %1809 = sbr.rel (%p1807) target = $region119
      $region118: #{tpu_custom_call.1} parent=5 // pred_region
        %s1810 = ssub.s32 %s33, 2
        // Predicated region
        $region120: #{tpu_custom_call.1} parent=118 // pred_check
          %p1811 = pneg %p429
        $region121: #{tpu_custom_call.1} parent=118 // pred_check_branch
          %1813 = sbr.rel (%p1811) target = $region123
        $region122: #{tpu_custom_call.1} parent=118 // pred_region
          %s1814 = sand.u32 %s414, 1
          %s1815 = scalar_lea.sflag [#allocation4], %s1814
          %s1816 = sand.u32 %s414, 1
          %s1817 = smul.addr %s1816, 8
          %s1818 = scalar_lea.vmem [#allocation10], %s1817
          %1819 = dma.done %s1815, 128
        $region123: #{tpu_custom_call.1} parent=118 // pred_fallthru
          _
      $region119: #{tpu_custom_call.1} parent=5 // pred_fallthru
        _
    $region6: #{tpu_custom_call.1} parent=1 // loop_footer
      %s37 = sadd.s32 1, %s33
    $region7: #{tpu_custom_call.1} parent=1 // loop_footer_branch
      %32 = sbr.rel target = $region3
    $region8: #{tpu_custom_call.1} parent=1 // loop_exit
      _
    %1820 = vsyncpa [#allocation3], 1
    %s1821 = scalar_lea.sflag [#allocation3], 1
    %1822 = vsyncpa %s1821, 1
    %1823 = vsyncpa [#allocation6], 1
    %s1824 = scalar_lea.sflag [#allocation6], 1
    %1825 = vsyncpa %s1824, 1
    %1826 = vsyncpa [#allocation9], 1
    %1827 = vsyncpa [#allocation4], 1
    %s1828 = scalar_lea.sflag [#allocation4], 1
    %1829 = vsyncpa %s1828, 1

</llo_original>
